<compile_context>
chip_gen: v7x
topology: tpu7x:2x2x1
jax: 0.10.0
libtpu: 0.0.40
codegen_flags: <defaults>
</compile_context>

<pallas_src>
import functools

import numpy as np
import jax
import jax.numpy as jnp
from jax.experimental import pallas as pl
from jax.experimental.pallas import tpu as pltpu

F32 = jnp.float32
LRELU_SLOPE = 0.01   # nn.LeakyReLU default
BN_EPS = 1e-5        # nn.BatchNorm2d default

C_IN = 128           # Linear in_features
C_MID = 512          # conv in_channels
H_MID = 3            # height after .view(-1, 512, 3, 1)
KH = 2               # conv kernel height
C_OUT = 256          # conv out_channels
H_OUT = H_MID - KH + 1   # = 2


def _round_up(x, m):
    return ((x + m - 1) // m) * m


# --------------------------- fused Pallas kernel -----------------------------

def _fused_kernel(x_ref, wf_ref, bf_ref, w2_ref, s_ref, t_ref, o_ref, *,
                  c_mid, h_out):
    # Linear(128 -> 1536); output columns permuted height-major (h*c_mid + ci).
    y = jnp.dot(x_ref[...], wf_ref[...],
                preferred_element_type=jnp.float32) + bf_ref[...]
    w2 = w2_ref[...]
    s = s_ref[...]
    t = t_ref[...]
    zs = []
    for h in range(h_out):
        # Conv2d(512, 256, (2,1)) at output height h == contiguous lane slice @ w2.
        yh = y[:, h * c_mid:(h + KH) * c_mid]            # (tile_m, 1024), 128-aligned
        zh = jnp.dot(yh, w2, preferred_element_type=jnp.float32)
        zh = zh * s + t                                   # folded eval-BN (+conv bias)
        zh = jnp.where(zh >= 0, zh, LRELU_SLOPE * zh)     # LeakyReLU
        zs.append(zh)
    o_ref[...] = jnp.concatenate(zs, axis=-1).astype(o_ref.dtype)   # lane-dense (tile_m, 512)


def _fused_call(x2d, wf, bf, w2, scale, shift):
    M = x2d.shape[0]
    tile_m = 256 if M >= 256 else _round_up(max(M, 1), 8)
    Mp = _round_up(M, tile_m)
    if Mp != M:
        x2d = jnp.pad(x2d, ((0, Mp - M), (0, 0)))
    n_out = H_OUT * C_OUT
    kernel = functools.partial(_fused_kernel, c_mid=C_MID, h_out=H_OUT)
    out = pl.pallas_call(
        kernel,
        out_shape=jax.ShapeDtypeStruct((Mp, n_out), F32),
        grid=(Mp // tile_m,),
        in_specs=[
            pl.BlockSpec((tile_m, C_IN), lambda i: (i, 0)),
            pl.BlockSpec((C_IN, H_MID * C_MID), lambda i: (0, 0)),
            pl.BlockSpec((1, H_MID * C_MID), lambda i: (0, 0)),
            pl.BlockSpec((KH * C_MID, C_OUT), lambda i: (0, 0)),
            pl.BlockSpec((1, C_OUT), lambda i: (0, 0)),
            pl.BlockSpec((1, C_OUT), lambda i: (0, 0)),
        ],
        out_specs=pl.BlockSpec((tile_m, n_out), lambda i: (i, 0)),
        compiler_params=pltpu.CompilerParams(
            dimension_semantics=("parallel",)),
    )(x2d, wf, bf, w2, scale, shift)
    return out[:M]


# ----------------------- parameter prep (trace-time folding) -----------------

def prepare_params(raw):
    """Permute / fold PyTorch-layout parameters into kernel-ready tensors (done once)."""
    # fc weight (1536,128): fc(x) = x @ fc_w.T + fc_b.  Permute the 1536 outputs
    # from PyTorch's .view(-1,512,3,1) order j = ci*3 + h  to  j' = h*512 + ci.
    wf = jnp.transpose(raw["fc_w"]).reshape(C_IN, C_MID, H_MID)        # (128, 512, 3)
    wf = jnp.transpose(wf, (0, 2, 1)).reshape(C_IN, H_MID * C_MID)     # (128, 1536) h-major
    bf = jnp.transpose(raw["fc_b"].reshape(C_MID, H_MID)).reshape(1, H_MID * C_MID)

    # Conv2d weight (256, 512, 2, 1) -> rows ordered (kh*512 + ci), cols = co.
    wc = raw["conv_w"][..., 0]                                         # (256, 512, 2)
    w2 = jnp.transpose(wc, (2, 1, 0)).reshape(KH * C_MID, C_OUT)       # (1024, 256)

    # Fold eval BatchNorm (+ the conv bias) into a per-channel scale/shift.
    scale = raw["bn_gamma"] / jnp.sqrt(raw["bn_var"] + BN_EPS)
    shift = raw["bn_beta"] - raw["bn_mean"] * scale + raw["conv_b"] * scale
    return {
        "wf": wf.astype(F32),
        "bf": bf.astype(F32),
        "w2": w2.astype(F32),
        "scale": scale.reshape(1, C_OUT).astype(F32),
        "shift": shift.reshape(1, C_OUT).astype(F32),
    }


def identity_encoder_gcn_forward(prep, x):
    x2d = x.reshape(-1, C_IN)                                          # x.view(-1, 128)
    flat = _fused_call(x2d, prep["wf"], prep["bf"], prep["w2"],
                       prep["scale"], prep["shift"])                   # (B, 2*256), h-major
    B = x2d.shape[0]
    # kernel output columns are (h*256 + co); back to PyTorch NCHW (B, 256, 2, 1).
    return jnp.transpose(flat.reshape(B, H_OUT, C_OUT), (0, 2, 1))[..., None]


# ------------------------- deterministic parameters --------------------------

def init_raw_params(seed=0):
    key = jax.random.PRNGKey(seed)
    ks = jax.random.split(key, 8)

    def u(k, shape, fan_in):
        bound = 1.0 / np.sqrt(float(fan_in))
        return jax.random.uniform(k, shape, F32, -bound, bound)

    return {
        "fc_w": u(ks[0], (H_MID * C_MID, C_IN), C_IN),              # (1536, 128) PyTorch layout
        "fc_b": u(ks[1], (H_MID * C_MID,), C_IN),
        "conv_w": u(ks[2], (C_OUT, C_MID, KH, 1), C_MID * KH),      # (256, 512, 2, 1)
        "conv_b": u(ks[3], (C_OUT,), C_MID * KH),
        "bn_gamma": 1.0 + 0.1 * jax.random.normal(ks[4], (C_OUT,), F32),
        "bn_beta": 0.1 * jax.random.normal(ks[5], (C_OUT,), F32),
        "bn_mean": 0.1 * jax.random.normal(ks[6], (C_OUT,), F32),
        "bn_var": 1.0 + jnp.abs(0.1 * jax.random.normal(ks[7], (C_OUT,), F32)),
    }


if __name__ == "__main__":
    raw = init_raw_params(seed=0)
    prep = prepare_params(raw)

    # x: any shape with numel % 128 == 0; forward does x.view(-1, 128).
    x = jax.random.normal(jax.random.PRNGKey(0), (2, 3, C_IN), F32)   # -> B = 6 rows

    fwd = jax.jit(identity_encoder_gcn_forward)
    out = fwd(prep, x)
    jax.block_until_ready(out)

    assert out.shape == (6, C_OUT, H_OUT, 1), out.shape
    assert bool(jnp.all(jnp.isfinite(out)))
    print("KERNEL_OK")
</pallas_src>

<mosaic_0001>
module attributes {stable_mosaic.version = 11 : i64} {
  func.func @_fused_kernel(%arg0: i32, %arg1: memref<8x128xf32, #tpu.memory_space<vmem>>, %arg2: memref<128x1536xf32, #tpu.memory_space<vmem>>, %arg3: memref<1x1536xf32, #tpu.memory_space<vmem>>, %arg4: memref<1024x256xf32, #tpu.memory_space<vmem>>, %arg5: memref<1x256xf32, #tpu.memory_space<vmem>>, %arg6: memref<1x256xf32, #tpu.memory_space<vmem>>, %arg7: memref<8x512xf32, #tpu.memory_space<vmem>>) attributes {dimension_semantics = [#tpu.dimension_semantics<parallel>], iteration_bounds = array<i64: 1>, scalar_prefetch = 0 : i64, scratch_operands = 0 : i64, tpu.core_type = #tpu.core_type<tc>, window_params = [{transform_indices = @transform_0, window_bounds = array<i64: 8, 128>}, {pipeline_mode = #tpu.pipeline_mode<synchronous>, transform_indices = @transform_1, window_bounds = array<i64: 128, 1536>}, {pipeline_mode = #tpu.pipeline_mode<synchronous>, transform_indices = @transform_2, window_bounds = array<i64: 1, 1536>}, {pipeline_mode = #tpu.pipeline_mode<synchronous>, transform_indices = @transform_3, window_bounds = array<i64: 1024, 256>}, {pipeline_mode = #tpu.pipeline_mode<synchronous>, transform_indices = @transform_4, window_bounds = array<i64: 1, 256>}, {pipeline_mode = #tpu.pipeline_mode<synchronous>, transform_indices = @transform_5, window_bounds = array<i64: 1, 256>}, {transform_indices = @transform_6, window_bounds = array<i64: 8, 512>}]} {
    %c0 = arith.constant 0 : index
    %c0_0 = arith.constant 0 : index
    %0 = vector.load %arg1[%c0, %c0_0] : memref<8x128xf32, #tpu.memory_space<vmem>>, vector<8x128xf32>
    %c0_1 = arith.constant 0 : index
    %c0_2 = arith.constant 0 : index
    %1 = vector.load %arg2[%c0_1, %c0_2] : memref<128x1536xf32, #tpu.memory_space<vmem>>, vector<128x1536xf32>
    %cst = arith.constant dense<0.000000e+00> : vector<8x1536xf32>
    %2 = tpu.matmul %0, %1, %cst {dimension_numbers = #tpu.dot_dimension_numbers<[1], [0], [0], [1], [0, 0, 1, 1], [], []>} : vector<8x128xf32>, vector<128x1536xf32>, vector<8x1536xf32> -> vector<8x1536xf32>
    %c0_3 = arith.constant 0 : index
    %c0_4 = arith.constant 0 : index
    %3 = vector.load %arg3[%c0_3, %c0_4] : memref<1x1536xf32, #tpu.memory_space<vmem>>, vector<1x1536xf32>
    %4 = vector.broadcast %3 : vector<1x1536xf32> to vector<8x1536xf32>
    %5 = arith.addf %2, %4 : vector<8x1536xf32>
    %c0_5 = arith.constant 0 : index
    %c0_6 = arith.constant 0 : index
    %6 = vector.load %arg4[%c0_5, %c0_6] : memref<1024x256xf32, #tpu.memory_space<vmem>>, vector<1024x256xf32>
    %c0_7 = arith.constant 0 : index
    %c0_8 = arith.constant 0 : index
    %7 = vector.load %arg5[%c0_7, %c0_8] : memref<1x256xf32, #tpu.memory_space<vmem>>, vector<1x256xf32>
    %c0_9 = arith.constant 0 : index
    %c0_10 = arith.constant 0 : index
    %8 = vector.load %arg6[%c0_9, %c0_10] : memref<1x256xf32, #tpu.memory_space<vmem>>, vector<1x256xf32>
    %9 = vector.extract_strided_slice %5 {offsets = [0, 0], sizes = [8, 1024], strides = [1, 1]} : vector<8x1536xf32> to vector<8x1024xf32>
    %cst_11 = arith.constant dense<0.000000e+00> : vector<8x256xf32>
    %10 = tpu.matmul %9, %6, %cst_11 {dimension_numbers = #tpu.dot_dimension_numbers<[1], [0], [0], [1], [0, 0, 1, 1], [], []>} : vector<8x1024xf32>, vector<1024x256xf32>, vector<8x256xf32> -> vector<8x256xf32>
    %11 = vector.broadcast %7 : vector<1x256xf32> to vector<8x256xf32>
    %12 = arith.mulf %10, %11 : vector<8x256xf32>
    %13 = vector.broadcast %8 : vector<1x256xf32> to vector<8x256xf32>
    %14 = arith.addf %12, %13 : vector<8x256xf32>
    %cst_12 = arith.constant 0.000000e+00 : f32
    %15 = vector.broadcast %cst_12 : f32 to vector<8x256xf32>
    %16 = arith.cmpf oge, %14, %15 : vector<8x256xf32>
    %cst_13 = arith.constant 0.00999999977 : f32
    %17 = vector.broadcast %cst_13 : f32 to vector<8x256xf32>
    %18 = arith.mulf %17, %14 : vector<8x256xf32>
    %19 = arith.select %16, %14, %18 : vector<8x256xi1>, vector<8x256xf32>
    %20 = vector.extract_strided_slice %5 {offsets = [0, 512], sizes = [8, 1024], strides = [1, 1]} : vector<8x1536xf32> to vector<8x1024xf32>
    %cst_14 = arith.constant dense<0.000000e+00> : vector<8x256xf32>
    %21 = tpu.matmul %20, %6, %cst_14 {dimension_numbers = #tpu.dot_dimension_numbers<[1], [0], [0], [1], [0, 0, 1, 1], [], []>} : vector<8x1024xf32>, vector<1024x256xf32>, vector<8x256xf32> -> vector<8x256xf32>
    %22 = vector.broadcast %7 : vector<1x256xf32> to vector<8x256xf32>
    %23 = arith.mulf %21, %22 : vector<8x256xf32>
    %24 = vector.broadcast %8 : vector<1x256xf32> to vector<8x256xf32>
    %25 = arith.addf %23, %24 : vector<8x256xf32>
    %cst_15 = arith.constant 0.000000e+00 : f32
    %26 = vector.broadcast %cst_15 : f32 to vector<8x256xf32>
    %27 = arith.cmpf oge, %25, %26 : vector<8x256xf32>
    %cst_16 = arith.constant 0.00999999977 : f32
    %28 = vector.broadcast %cst_16 : f32 to vector<8x256xf32>
    %29 = arith.mulf %28, %25 : vector<8x256xf32>
    %30 = arith.select %27, %25, %29 : vector<8x256xi1>, vector<8x256xf32>
    %31 = tpu.concatenate %19, %30 in 1 : vector<8x256xf32>, vector<8x256xf32> -> vector<8x512xf32>
    %c0_17 = arith.constant 0 : index
    %c0_18 = arith.constant 0 : index
    %32 = vector.load %arg7[%c0_17, %c0_18] : memref<8x512xf32, #tpu.memory_space<vmem>>, vector<8x512xf32>
    tpu.vector_store %arg7[%c0_17, %c0_18], %31 {strides = array<i32>} : memref<8x512xf32, #tpu.memory_space<vmem>>, vector<8x512xf32>,
    return
  }
  func.func @transform_0(%arg0: i32) -> (i32, i32) {
    %c0_i32 = arith.constant 0 : i32
    %c0_i32_0 = arith.constant 0 : i32
    return %arg0, %c0_i32 : i32, i32
  }
  func.func @transform_1(%arg0: i32) -> (i32, i32) {
    %c0_i32 = arith.constant 0 : i32
    %c0_i32_0 = arith.constant 0 : i32
    %c0_i32_1 = arith.constant 0 : i32
    return %c0_i32, %c0_i32_0 : i32, i32
  }
  func.func @transform_2(%arg0: i32) -> (i32, i32) {
    %c0_i32 = arith.constant 0 : i32
    %c0_i32_0 = arith.constant 0 : i32
    %c0_i32_1 = arith.constant 0 : i32
    return %c0_i32, %c0_i32_0 : i32, i32
  }
  func.func @transform_3(%arg0: i32) -> (i32, i32) {
    %c0_i32 = arith.constant 0 : i32
    %c0_i32_0 = arith.constant 0 : i32
    %c0_i32_1 = arith.constant 0 : i32
    return %c0_i32, %c0_i32_0 : i32, i32
  }
  func.func @transform_4(%arg0: i32) -> (i32, i32) {
    %c0_i32 = arith.constant 0 : i32
    %c0_i32_0 = arith.constant 0 : i32
    %c0_i32_1 = arith.constant 0 : i32
    return %c0_i32, %c0_i32_0 : i32, i32
  }
  func.func @transform_5(%arg0: i32) -> (i32, i32) {
    %c0_i32 = arith.constant 0 : i32
    %c0_i32_0 = arith.constant 0 : i32
    %c0_i32_1 = arith.constant 0 : i32
    return %c0_i32, %c0_i32_0 : i32, i32
  }
  func.func @transform_6(%arg0: i32) -> (i32, i32) {
    %c0_i32 = arith.constant 0 : i32
    %c0_i32_0 = arith.constant 0 : i32
    return %arg0, %c0_i32 : i32, i32
  }
}

</mosaic_0001>

<llo_original>
// kernel: identity_encoder_gcn_forward.1
$region0: #{identity_encoder_gcn_forward.1}
  #allocation0 [shape = 'u32[]', space=smem, size = 0x4, offset = 0x4, fixed_abs, tag = 'smem constant byte address 0x4 - core index']
  #allocation1 [shape = 'u32[144,128]{1,0:T(1,128)}', space=vmem, size = 0x12000, scoped, tag = 'internal scratch']
  %s0 = inlined_call_operand.vmem [shape: f32[8,128], index: 0, kind: input, shape index: {}]
  %s1 = inlined_call_operand.hbm [shape: f32[128,1536], index: 1, kind: input, shape index: {}]
  %s2 = inlined_call_operand.vmem [shape: f32[1,1536], index: 2, kind: input, shape index: {}]
  %s3 = inlined_call_operand.hbm [shape: f32[1024,256], index: 3, kind: input, shape index: {}]
  %s4 = inlined_call_operand.vmem [shape: f32[1,256], index: 4, kind: input, shape index: {}]
  %s5 = inlined_call_operand.vmem [shape: f32[1,256], index: 5, kind: input, shape index: {}]
  %s6 = inlined_call_operand.vmem [shape: f32[8,512], index: 6, kind: output, shape index: {}]
  %s7 = sld [smem:[#allocation0]]
  $region42: #{identity_encoder_gcn_forward.1} parent=0
    _
  %s9 = ssub.s32 1, %s7
  %s10 = scalar_select 0, %s9, %s7
  $region1: #{identity_encoder_gcn_forward.1} parent=0
    #allocation2 [shape = 'u8[786432]{0}', space=vmem, size = 0xc0000, scoped, tag = 'input window, operand 1, single buffered']
    #allocation3 [shape = 's32[1]{0}', space=sflag, size = 0x4, scoped, tag = 'scoped memory for identity_encoder_gcn_forward.1']
    #allocation4 [shape = 'u8[1048576]{0}', space=vmem, size = 0x100000, scoped, tag = 'input window, operand 3, single buffered']
    #allocation5 [shape = 's32[1]{0}', space=sflag, size = 0x4, scoped, tag = 'scoped memory for identity_encoder_gcn_forward.1']
    %11 = vsyncpa [#allocation3], 0
    %12 = vsyncpa [#allocation5], 0
    // Predicated region
    $region2: #{identity_encoder_gcn_forward.1} parent=1 // pred_check
      _
    $region3: #{identity_encoder_gcn_forward.1} parent=1 // pred_check_branch
      %14 = sbr.rel (0) target = $region5
    $region4: #{identity_encoder_gcn_forward.1} parent=1 // pred_region
      _
    $region5: #{identity_encoder_gcn_forward.1} parent=1 // pred_fallthru
      _
    // Predicated region
    $region6: #{identity_encoder_gcn_forward.1} parent=1 // pred_check
      _
    $region7: #{identity_encoder_gcn_forward.1} parent=1 // pred_check_branch
      %16 = sbr.rel (0) target = $region9
    $region8: #{identity_encoder_gcn_forward.1} parent=1 // pred_region
      %s18 = ssub.s32 24576, 24576
      %19 = vsyncadd [#allocation3], %s18
      %s20 = sshll.u32 [#allocation2], 4
      %s21 = int_to_ptr.vmem [resolvable:$true] %s20
      %26 = dma.hbm_to_vmem [thread:$0]  %s1, 24576, %s21, [#allocation3], 1536, 1536, 96
    $region9: #{identity_encoder_gcn_forward.1} parent=1 // pred_fallthru
      _
    // Predicated region
    $region10: #{identity_encoder_gcn_forward.1} parent=1 // pred_check
      _
    $region11: #{identity_encoder_gcn_forward.1} parent=1 // pred_check_branch
      %28 = sbr.rel (0) target = $region13
    $region12: #{identity_encoder_gcn_forward.1} parent=1 // pred_region
      _
    $region13: #{identity_encoder_gcn_forward.1} parent=1 // pred_fallthru
      _
    // Predicated region
    $region14: #{identity_encoder_gcn_forward.1} parent=1 // pred_check
      _
    $region15: #{identity_encoder_gcn_forward.1} parent=1 // pred_check_branch
      %30 = sbr.rel (0) target = $region17
    $region16: #{identity_encoder_gcn_forward.1} parent=1 // pred_region
      %s32 = ssub.s32 32768, 32768
      %33 = vsyncadd [#allocation5], %s32
      %s34 = sshll.u32 [#allocation4], 4
      %s35 = int_to_ptr.vmem [resolvable:$true] %s34
      %40 = dma.hbm_to_vmem [thread:$0]  %s3, 32768, %s35, [#allocation5], 256, 256, 16
    $region17: #{identity_encoder_gcn_forward.1} parent=1 // pred_fallthru
      _
    // Predicated region
    $region18: #{identity_encoder_gcn_forward.1} parent=1 // pred_check
      _
    $region19: #{identity_encoder_gcn_forward.1} parent=1 // pred_check_branch
      %42 = sbr.rel (0) target = $region21
    $region20: #{identity_encoder_gcn_forward.1} parent=1 // pred_region
      _
    $region21: #{identity_encoder_gcn_forward.1} parent=1 // pred_fallthru
      _
    // Predicated region
    $region22: #{identity_encoder_gcn_forward.1} parent=1 // pred_check
      _
    $region23: #{identity_encoder_gcn_forward.1} parent=1 // pred_check_branch
      %44 = sbr.rel (0) target = $region25
    $region24: #{identity_encoder_gcn_forward.1} parent=1 // pred_region
      _
    $region25: #{identity_encoder_gcn_forward.1} parent=1 // pred_fallthru
      _
    // Predicated region
    $region26: #{identity_encoder_gcn_forward.1} parent=1 // pred_check
      _
    $region27: #{identity_encoder_gcn_forward.1} parent=1 // pred_check_branch
      %46 = sbr.rel (0) target = $region29
    $region28: #{identity_encoder_gcn_forward.1} parent=1 // pred_region
      %47 = dma.done [#allocation3], 24576
    $region29: #{identity_encoder_gcn_forward.1} parent=1 // pred_fallthru
      _
    // Predicated region
    $region30: #{identity_encoder_gcn_forward.1} parent=1 // pred_check
      _
    $region31: #{identity_encoder_gcn_forward.1} parent=1 // pred_check_branch
      %49 = sbr.rel (0) target = $region33
    $region32: #{identity_encoder_gcn_forward.1} parent=1 // pred_region
      %50 = dma.done [#allocation5], 32768
    $region33: #{identity_encoder_gcn_forward.1} parent=1 // pred_fallthru
      _
    %v51 = vld [vmem:[%s0] sm:$0xff]
    %v52 = vld [vmem:[#allocation2] sm:$0xff]
    %v53 = vld [vmem:[#allocation2 + $0x8] sm:$0xff]
    %v54 = vld [vmem:[#allocation2 + $0x10] sm:$0xff]
    %v55 = vld [vmem:[#allocation2 + $0x18] sm:$0xff]
    %v56 = vld [vmem:[#allocation2 + $0x20] sm:$0xff]
    %v57 = vld [vmem:[#allocation2 + $0x28] sm:$0xff]
    %v58 = vld [vmem:[#allocation2 + $0x30] sm:$0xff]
    %v59 = vld [vmem:[#allocation2 + $0x38] sm:$0xff]
    %v60 = vld [vmem:[#allocation2 + $0x40] sm:$0xff]
    %v61 = vld [vmem:[#allocation2 + $0x48] sm:$0xff]
    %v62 = vld [vmem:[#allocation2 + $0x50] sm:$0xff]
    %v63 = vld [vmem:[#allocation2 + $0x58] sm:$0xff]
    %v64 = vld [vmem:[#allocation2 + $0x60] sm:$0xff]
    %v65 = vld [vmem:[#allocation2 + $0x68] sm:$0xff]
    %v66 = vld [vmem:[#allocation2 + $0x70] sm:$0xff]
    %v67 = vld [vmem:[#allocation2 + $0x78] sm:$0xff]
    %v68 = vld [vmem:[#allocation2 + $0x80] sm:$0xff]
    %v69 = vld [vmem:[#allocation2 + $0x88] sm:$0xff]
    %v70 = vld [vmem:[#allocation2 + $0x90] sm:$0xff]
    %v71 = vld [vmem:[#allocation2 + $0x98] sm:$0xff]
    %v72 = vld [vmem:[#allocation2 + $0xa0] sm:$0xff]
    %v73 = vld [vmem:[#allocation2 + $0xa8] sm:$0xff]
    %v74 = vld [vmem:[#allocation2 + $0xb0] sm:$0xff]
    %v75 = vld [vmem:[#allocation2 + $0xb8] sm:$0xff]
    %v76 = vld [vmem:[#allocation2 + $0xc0] sm:$0xff]
    %v77 = vld [vmem:[#allocation2 + $0xc8] sm:$0xff]
    %v78 = vld [vmem:[#allocation2 + $0xd0] sm:$0xff]
    %v79 = vld [vmem:[#allocation2 + $0xd8] sm:$0xff]
    %v80 = vld [vmem:[#allocation2 + $0xe0] sm:$0xff]
    %v81 = vld [vmem:[#allocation2 + $0xe8] sm:$0xff]
    %v82 = vld [vmem:[#allocation2 + $0xf0] sm:$0xff]
    %v83 = vld [vmem:[#allocation2 + $0xf8] sm:$0xff]
    %v84 = vld [vmem:[#allocation2 + $0x100] sm:$0xff]
    %v85 = vld [vmem:[#allocation2 + $0x108] sm:$0xff]
    %v86 = vld [vmem:[#allocation2 + $0x110] sm:$0xff]
    %v87 = vld [vmem:[#allocation2 + $0x118] sm:$0xff]
    %v88 = vld [vmem:[#allocation2 + $0x120] sm:$0xff]
    %v89 = vld [vmem:[#allocation2 + $0x128] sm:$0xff]
    %v90 = vld [vmem:[#allocation2 + $0x130] sm:$0xff]
    %v91 = vld [vmem:[#allocation2 + $0x138] sm:$0xff]
    %v92 = vld [vmem:[#allocation2 + $0x140] sm:$0xff]
    %v93 = vld [vmem:[#allocation2 + $0x148] sm:$0xff]
    %v94 = vld [vmem:[#allocation2 + $0x150] sm:$0xff]
    %v95 = vld [vmem:[#allocation2 + $0x158] sm:$0xff]
    %v96 = vld [vmem:[#allocation2 + $0x160] sm:$0xff]
    %v97 = vld [vmem:[#allocation2 + $0x168] sm:$0xff]
    %v98 = vld [vmem:[#allocation2 + $0x170] sm:$0xff]
    %v99 = vld [vmem:[#allocation2 + $0x178] sm:$0xff]
    %v100 = vld [vmem:[#allocation2 + $0x180] sm:$0xff]
    %v101 = vld [vmem:[#allocation2 + $0x188] sm:$0xff]
    %v102 = vld [vmem:[#allocation2 + $0x190] sm:$0xff]
    %v103 = vld [vmem:[#allocation2 + $0x198] sm:$0xff]
    %v104 = vld [vmem:[#allocation2 + $0x1a0] sm:$0xff]
    %v105 = vld [vmem:[#allocation2 + $0x1a8] sm:$0xff]
    %v106 = vld [vmem:[#allocation2 + $0x1b0] sm:$0xff]
    %v107 = vld [vmem:[#allocation2 + $0x1b8] sm:$0xff]
    %v108 = vld [vmem:[#allocation2 + $0x1c0] sm:$0xff]
    %v109 = vld [vmem:[#allocation2 + $0x1c8] sm:$0xff]
    %v110 = vld [vmem:[#allocation2 + $0x1d0] sm:$0xff]
    %v111 = vld [vmem:[#allocation2 + $0x1d8] sm:$0xff]
    %v112 = vld [vmem:[#allocation2 + $0x1e0] sm:$0xff]
    %v113 = vld [vmem:[#allocation2 + $0x1e8] sm:$0xff]
    %v114 = vld [vmem:[#allocation2 + $0x1f0] sm:$0xff]
    %v115 = vld [vmem:[#allocation2 + $0x1f8] sm:$0xff]
    %v116 = vld [vmem:[#allocation2 + $0x200] sm:$0xff]
    %v117 = vld [vmem:[#allocation2 + $0x208] sm:$0xff]
    %v118 = vld [vmem:[#allocation2 + $0x210] sm:$0xff]
    %v119 = vld [vmem:[#allocation2 + $0x218] sm:$0xff]
    %v120 = vld [vmem:[#allocation2 + $0x220] sm:$0xff]
    %v121 = vld [vmem:[#allocation2 + $0x228] sm:$0xff]
    %v122 = vld [vmem:[#allocation2 + $0x230] sm:$0xff]
    %v123 = vld [vmem:[#allocation2 + $0x238] sm:$0xff]
    %v124 = vld [vmem:[#allocation2 + $0x240] sm:$0xff]
    %v125 = vld [vmem:[#allocation2 + $0x248] sm:$0xff]
    %v126 = vld [vmem:[#allocation2 + $0x250] sm:$0xff]
    %v127 = vld [vmem:[#allocation2 + $0x258] sm:$0xff]
    %v128 = vld [vmem:[#allocation2 + $0x260] sm:$0xff]
    %v129 = vld [vmem:[#allocation2 + $0x268] sm:$0xff]
    %v130 = vld [vmem:[#allocation2 + $0x270] sm:$0xff]
    %v131 = vld [vmem:[#allocation2 + $0x278] sm:$0xff]
    %v132 = vld [vmem:[#allocation2 + $0x280] sm:$0xff]
    %v133 = vld [vmem:[#allocation2 + $0x288] sm:$0xff]
    %v134 = vld [vmem:[#allocation2 + $0x290] sm:$0xff]
    %v135 = vld [vmem:[#allocation2 + $0x298] sm:$0xff]
    %v136 = vld [vmem:[#allocation2 + $0x2a0] sm:$0xff]
    %v137 = vld [vmem:[#allocation2 + $0x2a8] sm:$0xff]
    %v138 = vld [vmem:[#allocation2 + $0x2b0] sm:$0xff]
    %v139 = vld [vmem:[#allocation2 + $0x2b8] sm:$0xff]
    %v140 = vld [vmem:[#allocation2 + $0x2c0] sm:$0xff]
    %v141 = vld [vmem:[#allocation2 + $0x2c8] sm:$0xff]
    %v142 = vld [vmem:[#allocation2 + $0x2d0] sm:$0xff]
    %v143 = vld [vmem:[#allocation2 + $0x2d8] sm:$0xff]
    %v144 = vld [vmem:[#allocation2 + $0x2e0] sm:$0xff]
    %v145 = vld [vmem:[#allocation2 + $0x2e8] sm:$0xff]
    %v146 = vld [vmem:[#allocation2 + $0x2f0] sm:$0xff]
    %v147 = vld [vmem:[#allocation2 + $0x2f8] sm:$0xff]
    %v148 = vld [vmem:[#allocation2 + $0x300] sm:$0xff]
    %v149 = vld [vmem:[#allocation2 + $0x308] sm:$0xff]
    %v150 = vld [vmem:[#allocation2 + $0x310] sm:$0xff]
    %v151 = vld [vmem:[#allocation2 + $0x318] sm:$0xff]
    %v152 = vld [vmem:[#allocation2 + $0x320] sm:$0xff]
    %v153 = vld [vmem:[#allocation2 + $0x328] sm:$0xff]
    %v154 = vld [vmem:[#allocation2 + $0x330] sm:$0xff]
    %v155 = vld [vmem:[#allocation2 + $0x338] sm:$0xff]
    %v156 = vld [vmem:[#allocation2 + $0x340] sm:$0xff]
    %v157 = vld [vmem:[#allocation2 + $0x348] sm:$0xff]
    %v158 = vld [vmem:[#allocation2 + $0x350] sm:$0xff]
    %v159 = vld [vmem:[#allocation2 + $0x358] sm:$0xff]
    %v160 = vld [vmem:[#allocation2 + $0x360] sm:$0xff]
    %v161 = vld [vmem:[#allocation2 + $0x368] sm:$0xff]
    %v162 = vld [vmem:[#allocation2 + $0x370] sm:$0xff]
    %v163 = vld [vmem:[#allocation2 + $0x378] sm:$0xff]
    %v164 = vld [vmem:[#allocation2 + $0x380] sm:$0xff]
    %v165 = vld [vmem:[#allocation2 + $0x388] sm:$0xff]
    %v166 = vld [vmem:[#allocation2 + $0x390] sm:$0xff]
    %v167 = vld [vmem:[#allocation2 + $0x398] sm:$0xff]
    %v168 = vld [vmem:[#allocation2 + $0x3a0] sm:$0xff]
    %v169 = vld [vmem:[#allocation2 + $0x3a8] sm:$0xff]
    %v170 = vld [vmem:[#allocation2 + $0x3b0] sm:$0xff]
    %v171 = vld [vmem:[#allocation2 + $0x3b8] sm:$0xff]
    %v172 = vld [vmem:[#allocation2 + $0x3c0] sm:$0xff]
    %v173 = vld [vmem:[#allocation2 + $0x3c8] sm:$0xff]
    %v174 = vld [vmem:[#allocation2 + $0x3d0] sm:$0xff]
    %v175 = vld [vmem:[#allocation2 + $0x3d8] sm:$0xff]
    %v176 = vld [vmem:[#allocation2 + $0x3e0] sm:$0xff]
    %v177 = vld [vmem:[#allocation2 + $0x3e8] sm:$0xff]
    %v178 = vld [vmem:[#allocation2 + $0x3f0] sm:$0xff]
    %v179 = vld [vmem:[#allocation2 + $0x3f8] sm:$0xff]
    %v180 = vld [vmem:[#allocation2 + $0x400] sm:$0xff]
    %v181 = vld [vmem:[#allocation2 + $0x408] sm:$0xff]
    %v182 = vld [vmem:[#allocation2 + $0x410] sm:$0xff]
    %v183 = vld [vmem:[#allocation2 + $0x418] sm:$0xff]
    %v184 = vld [vmem:[#allocation2 + $0x420] sm:$0xff]
    %v185 = vld [vmem:[#allocation2 + $0x428] sm:$0xff]
    %v186 = vld [vmem:[#allocation2 + $0x430] sm:$0xff]
    %v187 = vld [vmem:[#allocation2 + $0x438] sm:$0xff]
    %v188 = vld [vmem:[#allocation2 + $0x440] sm:$0xff]
    %v189 = vld [vmem:[#allocation2 + $0x448] sm:$0xff]
    %v190 = vld [vmem:[#allocation2 + $0x450] sm:$0xff]
    %v191 = vld [vmem:[#allocation2 + $0x458] sm:$0xff]
    %v192 = vld [vmem:[#allocation2 + $0x460] sm:$0xff]
    %v193 = vld [vmem:[#allocation2 + $0x468] sm:$0xff]
    %v194 = vld [vmem:[#allocation2 + $0x470] sm:$0xff]
    %v195 = vld [vmem:[#allocation2 + $0x478] sm:$0xff]
    %v196 = vld [vmem:[#allocation2 + $0x480] sm:$0xff]
    %v197 = vld [vmem:[#allocation2 + $0x488] sm:$0xff]
    %v198 = vld [vmem:[#allocation2 + $0x490] sm:$0xff]
    %v199 = vld [vmem:[#allocation2 + $0x498] sm:$0xff]
    %v200 = vld [vmem:[#allocation2 + $0x4a0] sm:$0xff]
    %v201 = vld [vmem:[#allocation2 + $0x4a8] sm:$0xff]
    %v202 = vld [vmem:[#allocation2 + $0x4b0] sm:$0xff]
    %v203 = vld [vmem:[#allocation2 + $0x4b8] sm:$0xff]
    %v204 = vld [vmem:[#allocation2 + $0x4c0] sm:$0xff]
    %v205 = vld [vmem:[#allocation2 + $0x4c8] sm:$0xff]
    %v206 = vld [vmem:[#allocation2 + $0x4d0] sm:$0xff]
    %v207 = vld [vmem:[#allocation2 + $0x4d8] sm:$0xff]
    %v208 = vld [vmem:[#allocation2 + $0x4e0] sm:$0xff]
    %v209 = vld [vmem:[#allocation2 + $0x4e8] sm:$0xff]
    %v210 = vld [vmem:[#allocation2 + $0x4f0] sm:$0xff]
    %v211 = vld [vmem:[#allocation2 + $0x4f8] sm:$0xff]
    %v212 = vld [vmem:[#allocation2 + $0x500] sm:$0xff]
    %v213 = vld [vmem:[#allocation2 + $0x508] sm:$0xff]
    %v214 = vld [vmem:[#allocation2 + $0x510] sm:$0xff]
    %v215 = vld [vmem:[#allocation2 + $0x518] sm:$0xff]
    %v216 = vld [vmem:[#allocation2 + $0x520] sm:$0xff]
    %v217 = vld [vmem:[#allocation2 + $0x528] sm:$0xff]
    %v218 = vld [vmem:[#allocation2 + $0x530] sm:$0xff]
    %v219 = vld [vmem:[#allocation2 + $0x538] sm:$0xff]
    %v220 = vld [vmem:[#allocation2 + $0x540] sm:$0xff]
    %v221 = vld [vmem:[#allocation2 + $0x548] sm:$0xff]
    %v222 = vld [vmem:[#allocation2 + $0x550] sm:$0xff]
    %v223 = vld [vmem:[#allocation2 + $0x558] sm:$0xff]
    %v224 = vld [vmem:[#allocation2 + $0x560] sm:$0xff]
    %v225 = vld [vmem:[#allocation2 + $0x568] sm:$0xff]
    %v226 = vld [vmem:[#allocation2 + $0x570] sm:$0xff]
    %v227 = vld [vmem:[#allocation2 + $0x578] sm:$0xff]
    %v228 = vld [vmem:[#allocation2 + $0x580] sm:$0xff]
    %v229 = vld [vmem:[#allocation2 + $0x588] sm:$0xff]
    %v230 = vld [vmem:[#allocation2 + $0x590] sm:$0xff]
    %v231 = vld [vmem:[#allocation2 + $0x598] sm:$0xff]
    %v232 = vld [vmem:[#allocation2 + $0x5a0] sm:$0xff]
    %v233 = vld [vmem:[#allocation2 + $0x5a8] sm:$0xff]
    %v234 = vld [vmem:[#allocation2 + $0x5b0] sm:$0xff]
    %v235 = vld [vmem:[#allocation2 + $0x5b8] sm:$0xff]
    %v236 = vld [vmem:[#allocation2 + $0x5c0] sm:$0xff]
    %v237 = vld [vmem:[#allocation2 + $0x5c8] sm:$0xff]
    %v238 = vld [vmem:[#allocation2 + $0x5d0] sm:$0xff]
    %v239 = vld [vmem:[#allocation2 + $0x5d8] sm:$0xff]
    %v240 = vld [vmem:[#allocation2 + $0x5e0] sm:$0xff]
    %v241 = vld [vmem:[#allocation2 + $0x5e8] sm:$0xff]
    %v242 = vld [vmem:[#allocation2 + $0x5f0] sm:$0xff]
    %v243 = vld [vmem:[#allocation2 + $0x5f8] sm:$0xff]
    %v244 = vld [vmem:[%s2] sm:$0xff]
    %v245 = vld [vmem:[%s2 + $0x8] sm:$0xf]
    %v248 = vlaneseq
    %v249 = vshrl.u32 %v248, 7
    %v250 = vsub.s32 0, %v249
    %v251 = vrot.slane %v244, %v250
    %v252 = vlaneseq
    %v253 = vshrl.u32 %v252, 7
    %v254 = vsub.s32 1, %v253
    %v255 = vrot.slane %v244, %v254
    %v256 = vlaneseq
    %v257 = vshrl.u32 %v256, 7
    %v258 = vsub.s32 2, %v257
    %v259 = vrot.slane %v244, %v258
    %v260 = vlaneseq
    %v261 = vshrl.u32 %v260, 7
    %v262 = vsub.s32 3, %v261
    %v263 = vrot.slane %v244, %v262
    %v264 = vlaneseq
    %v265 = vshrl.u32 %v264, 7
    %v266 = vsub.s32 4, %v265
    %v267 = vrot.slane %v244, %v266
    %v268 = vlaneseq
    %v269 = vshrl.u32 %v268, 7
    %v270 = vsub.s32 5, %v269
    %v271 = vrot.slane %v244, %v270
    %v272 = vlaneseq
    %v273 = vshrl.u32 %v272, 7
    %v274 = vsub.s32 6, %v273
    %v275 = vrot.slane %v244, %v274
    %v276 = vlaneseq
    %v277 = vshrl.u32 %v276, 7
    %v278 = vsub.s32 7, %v277
    %v279 = vrot.slane %v244, %v278
    %v280 = vlaneseq
    %v281 = vshrl.u32 %v280, 7
    %v282 = vsub.s32 0, %v281
    %v283 = vrot.slane %v245, %v282
    %v284 = vlaneseq
    %v285 = vshrl.u32 %v284, 7
    %v286 = vsub.s32 1, %v285
    %v287 = vrot.slane %v245, %v286
    %v288 = vlaneseq
    %v289 = vshrl.u32 %v288, 7
    %v290 = vsub.s32 2, %v289
    %v291 = vrot.slane %v245, %v290
    %v292 = vlaneseq
    %v293 = vshrl.u32 %v292, 7
    %v294 = vsub.s32 3, %v293
    %v295 = vrot.slane %v245, %v294
    %308 = vmatprep.subr.mxu0 %v53
    %309 = vmatpush1.msra.mxu0 %v52
    %310 = vmatprep.subr.mxu0 %v65
    %311 = vmatpush1.msra.mxu0 %v64
    %312 = vmatprep.subr.mxu0 %v77
    %313 = vmatpush1.msra.mxu0 %v76
    %314 = vmatprep.subr.mxu0 %v89
    %315 = vmatpush1.msra.mxu0 %v88
    %316 = vmatprep.subr.mxu0 %v101
    %317 = vmatpush1.msra.mxu0 %v100
    %318 = vmatprep.subr.mxu0 %v113
    %319 = vmatpush1.msra.mxu0 %v112
    %320 = vmatprep.subr.mxu0 %v125
    %321 = vmatpush1.msra.mxu0 %v124
    %322 = vmatprep.subr.mxu0 %v137
    %323 = vmatpush1.msra.mxu0 %v136
    %324 = vmatprep.subr.mxu0 %v149
    %325 = vmatpush1.msra.mxu0 %v148
    %326 = vmatprep.subr.mxu0 %v161
    %327 = vmatpush1.msra.mxu0 %v160
    %328 = vmatprep.subr.mxu0 %v173
    %329 = vmatpush1.msra.mxu0 %v172
    %330 = vmatprep.subr.mxu0 %v185
    %331 = vmatpush1.msra.mxu0 %v184
    %332 = vmatprep.subr.mxu0 %v197
    %333 = vmatpush1.msra.mxu0 %v196
    %334 = vmatprep.subr.mxu0 %v209
    %335 = vmatpush1.msra.mxu0 %v208
    %336 = vmatprep.subr.mxu0 %v221
    %337 = vmatpush1.msra.mxu0 %v220
    %338 = vmatprep.subr.mxu0 %v233
    %339 = vmatpush1.msra.mxu0 %v232
    %340 = vmatprep.subr.mxu0 0.0
    %341 = vmatpush1.msra.mxu0 0.0
    %342 = vmatprep.subr.mxu0 0.0
    %343 = vmatpush1.msra.mxu0 0.0
    %344 = vmatprep.subr.mxu0 0.0
    %345 = vmatpush1.msra.mxu0 0.0
    %346 = vmatprep.subr.mxu0 0.0
    %347 = vmatpush1.msra.mxu0 0.0
    %348 = vmatprep.subr.mxu0 0.0
    %349 = vmatpush1.msra.mxu0 0.0
    %350 = vmatprep.subr.mxu0 0.0
    %351 = vmatpush1.msra.mxu0 0.0
    %352 = vmatprep.subr.mxu0 0.0
    %353 = vmatpush1.msra.mxu0 0.0
    %354 = vmatprep.subr.mxu0 0.0
    %355 = vmatpush1.msra.mxu0 0.0
    %356 = vmatprep.subr.mxu0 0.0
    %357 = vmatpush1.msra.mxu0 0.0
    %358 = vmatprep.subr.mxu0 0.0
    %359 = vmatpush1.msra.mxu0 0.0
    %360 = vmatprep.subr.mxu0 0.0
    %361 = vmatpush1.msra.mxu0 0.0
    %362 = vmatprep.subr.mxu0 0.0
    %363 = vmatpush1.msra.mxu0 0.0
    %364 = vmatprep.subr.mxu0 0.0
    %365 = vmatpush1.msra.mxu0 0.0
    %366 = vmatprep.subr.mxu0 0.0
    %367 = vmatpush1.msra.mxu0 0.0
    %368 = vmatprep.subr.mxu0 0.0
    %369 = vmatpush1.msra.mxu0 0.0
    %370 = vmatprep.subr.mxu0 0.0
    %371 = vmatpush1.msra.mxu0 0.0
    %372 = vmatprep.mubr.f32.mxu0 0.0
    %373 = vmatmul.mubr.f32.gmra.mrb[0].mxu0 %v51
    %v374 = vpop.f32.mrb[0].mxu0
    %v375 = vadd.f32 %v251, %v374
    %v376 = vpop.f32.mrb[0].mxu0
    %v377 = vadd.f32 %v255, %v376
    %378 = vdwg.mxu0
    %379 = vmatprep.subr.mxu0 %v55
    %380 = vmatpush1.msra.mxu0 %v54
    %381 = vmatprep.subr.mxu0 %v67
    %382 = vmatpush1.msra.mxu0 %v66
    %383 = vmatprep.subr.mxu0 %v79
    %384 = vmatpush1.msra.mxu0 %v78
    %385 = vmatprep.subr.mxu0 %v91
    %386 = vmatpush1.msra.mxu0 %v90
    %387 = vmatprep.subr.mxu0 %v103
    %388 = vmatpush1.msra.mxu0 %v102
    %389 = vmatprep.subr.mxu0 %v115
    %390 = vmatpush1.msra.mxu0 %v114
    %391 = vmatprep.subr.mxu0 %v127
    %392 = vmatpush1.msra.mxu0 %v126
    %393 = vmatprep.subr.mxu0 %v139
    %394 = vmatpush1.msra.mxu0 %v138
    %395 = vmatprep.subr.mxu0 %v151
    %396 = vmatpush1.msra.mxu0 %v150
    %397 = vmatprep.subr.mxu0 %v163
    %398 = vmatpush1.msra.mxu0 %v162
    %399 = vmatprep.subr.mxu0 %v175
    %400 = vmatpush1.msra.mxu0 %v174
    %401 = vmatprep.subr.mxu0 %v187
    %402 = vmatpush1.msra.mxu0 %v186
    %403 = vmatprep.subr.mxu0 %v199
    %404 = vmatpush1.msra.mxu0 %v198
    %405 = vmatprep.subr.mxu0 %v211
    %406 = vmatpush1.msra.mxu0 %v210
    %407 = vmatprep.subr.mxu0 %v223
    %408 = vmatpush1.msra.mxu0 %v222
    %409 = vmatprep.subr.mxu0 %v235
    %410 = vmatpush1.msra.mxu0 %v234
    %411 = vmatprep.subr.mxu0 0.0
    %412 = vmatpush1.msra.mxu0 0.0
    %413 = vmatprep.subr.mxu0 0.0
    %414 = vmatpush1.msra.mxu0 0.0
    %415 = vmatprep.subr.mxu0 0.0
    %416 = vmatpush1.msra.mxu0 0.0
    %417 = vmatprep.subr.mxu0 0.0
    %418 = vmatpush1.msra.mxu0 0.0
    %419 = vmatprep.subr.mxu0 0.0
    %420 = vmatpush1.msra.mxu0 0.0
    %421 = vmatprep.subr.mxu0 0.0
    %422 = vmatpush1.msra.mxu0 0.0
    %423 = vmatprep.subr.mxu0 0.0
    %424 = vmatpush1.msra.mxu0 0.0
    %425 = vmatprep.subr.mxu0 0.0
    %426 = vmatpush1.msra.mxu0 0.0
    %427 = vmatprep.subr.mxu0 0.0
    %428 = vmatpush1.msra.mxu0 0.0
    %429 = vmatprep.subr.mxu0 0.0
    %430 = vmatpush1.msra.mxu0 0.0
    %431 = vmatprep.subr.mxu0 0.0
    %432 = vmatpush1.msra.mxu0 0.0
    %433 = vmatprep.subr.mxu0 0.0
    %434 = vmatpush1.msra.mxu0 0.0
    %435 = vmatprep.subr.mxu0 0.0
    %436 = vmatpush1.msra.mxu0 0.0
    %437 = vmatprep.subr.mxu0 0.0
    %438 = vmatpush1.msra.mxu0 0.0
    %439 = vmatprep.subr.mxu0 0.0
    %440 = vmatpush1.msra.mxu0 0.0
    %441 = vmatprep.subr.mxu0 0.0
    %442 = vmatpush1.msra.mxu0 0.0
    %443 = vmatprep.mubr.f32.mxu0 0.0
    %444 = vmatmul.mubr.f32.gmra.mrb[0].mxu0 %v51
    %v445 = vpop.f32.mrb[0].mxu0
    %v446 = vadd.f32 %v259, %v445
    %v447 = vpop.f32.mrb[0].mxu0
    %v448 = vadd.f32 %v263, %v447
    %449 = vdwg.mxu0
    %450 = vmatprep.subr.mxu0 %v57
    %451 = vmatpush1.msra.mxu0 %v56
    %452 = vmatprep.subr.mxu0 %v69
    %453 = vmatpush1.msra.mxu0 %v68
    %454 = vmatprep.subr.mxu0 %v81
    %455 = vmatpush1.msra.mxu0 %v80
    %456 = vmatprep.subr.mxu0 %v93
    %457 = vmatpush1.msra.mxu0 %v92
    %458 = vmatprep.subr.mxu0 %v105
    %459 = vmatpush1.msra.mxu0 %v104
    %460 = vmatprep.subr.mxu0 %v117
    %461 = vmatpush1.msra.mxu0 %v116
    %462 = vmatprep.subr.mxu0 %v129
    %463 = vmatpush1.msra.mxu0 %v128
    %464 = vmatprep.subr.mxu0 %v141
    %465 = vmatpush1.msra.mxu0 %v140
    %466 = vmatprep.subr.mxu0 %v153
    %467 = vmatpush1.msra.mxu0 %v152
    %468 = vmatprep.subr.mxu0 %v165
    %469 = vmatpush1.msra.mxu0 %v164
    %470 = vmatprep.subr.mxu0 %v177
    %471 = vmatpush1.msra.mxu0 %v176
    %472 = vmatprep.subr.mxu0 %v189
    %473 = vmatpush1.msra.mxu0 %v188
    %474 = vmatprep.subr.mxu0 %v201
    %475 = vmatpush1.msra.mxu0 %v200
    %476 = vmatprep.subr.mxu0 %v213
    %477 = vmatpush1.msra.mxu0 %v212
    %478 = vmatprep.subr.mxu0 %v225
    %479 = vmatpush1.msra.mxu0 %v224
    %480 = vmatprep.subr.mxu0 %v237
    %481 = vmatpush1.msra.mxu0 %v236
    %482 = vmatprep.subr.mxu0 0.0
    %483 = vmatpush1.msra.mxu0 0.0
    %484 = vmatprep.subr.mxu0 0.0
    %485 = vmatpush1.msra.mxu0 0.0
    %486 = vmatprep.subr.mxu0 0.0
    %487 = vmatpush1.msra.mxu0 0.0
    %488 = vmatprep.subr.mxu0 0.0
    %489 = vmatpush1.msra.mxu0 0.0
    %490 = vmatprep.subr.mxu0 0.0
    %491 = vmatpush1.msra.mxu0 0.0
    %492 = vmatprep.subr.mxu0 0.0
    %493 = vmatpush1.msra.mxu0 0.0
    %494 = vmatprep.subr.mxu0 0.0
    %495 = vmatpush1.msra.mxu0 0.0
    %496 = vmatprep.subr.mxu0 0.0
    %497 = vmatpush1.msra.mxu0 0.0
    %498 = vmatprep.subr.mxu0 0.0
    %499 = vmatpush1.msra.mxu0 0.0
    %500 = vmatprep.subr.mxu0 0.0
    %501 = vmatpush1.msra.mxu0 0.0
    %502 = vmatprep.subr.mxu0 0.0
    %503 = vmatpush1.msra.mxu0 0.0
    %504 = vmatprep.subr.mxu0 0.0
    %505 = vmatpush1.msra.mxu0 0.0
    %506 = vmatprep.subr.mxu0 0.0
    %507 = vmatpush1.msra.mxu0 0.0
    %508 = vmatprep.subr.mxu0 0.0
    %509 = vmatpush1.msra.mxu0 0.0
    %510 = vmatprep.subr.mxu0 0.0
    %511 = vmatpush1.msra.mxu0 0.0
    %512 = vmatprep.subr.mxu0 0.0
    %513 = vmatpush1.msra.mxu0 0.0
    %514 = vmatprep.mubr.f32.mxu0 0.0
    %515 = vmatmul.mubr.f32.gmra.mrb[0].mxu0 %v51
    %v516 = vpop.f32.mrb[0].mxu0
    %v517 = vadd.f32 %v267, %v516
    %v518 = vpop.f32.mrb[0].mxu0
    %v519 = vadd.f32 %v271, %v518
    %520 = vdwg.mxu0
    %521 = vmatprep.subr.mxu0 %v59
    %522 = vmatpush1.msra.mxu0 %v58
    %523 = vmatprep.subr.mxu0 %v71
    %524 = vmatpush1.msra.mxu0 %v70
    %525 = vmatprep.subr.mxu0 %v83
    %526 = vmatpush1.msra.mxu0 %v82
    %527 = vmatprep.subr.mxu0 %v95
    %528 = vmatpush1.msra.mxu0 %v94
    %529 = vmatprep.subr.mxu0 %v107
    %530 = vmatpush1.msra.mxu0 %v106
    %531 = vmatprep.subr.mxu0 %v119
    %532 = vmatpush1.msra.mxu0 %v118
    %533 = vmatprep.subr.mxu0 %v131
    %534 = vmatpush1.msra.mxu0 %v130
    %535 = vmatprep.subr.mxu0 %v143
    %536 = vmatpush1.msra.mxu0 %v142
    %537 = vmatprep.subr.mxu0 %v155
    %538 = vmatpush1.msra.mxu0 %v154
    %539 = vmatprep.subr.mxu0 %v167
    %540 = vmatpush1.msra.mxu0 %v166
    %541 = vmatprep.subr.mxu0 %v179
    %542 = vmatpush1.msra.mxu0 %v178
    %543 = vmatprep.subr.mxu0 %v191
    %544 = vmatpush1.msra.mxu0 %v190
    %545 = vmatprep.subr.mxu0 %v203
    %546 = vmatpush1.msra.mxu0 %v202
    %547 = vmatprep.subr.mxu0 %v215
    %548 = vmatpush1.msra.mxu0 %v214
    %549 = vmatprep.subr.mxu0 %v227
    %550 = vmatpush1.msra.mxu0 %v226
    %551 = vmatprep.subr.mxu0 %v239
    %552 = vmatpush1.msra.mxu0 %v238
    %553 = vmatprep.subr.mxu0 0.0
    %554 = vmatpush1.msra.mxu0 0.0
    %555 = vmatprep.subr.mxu0 0.0
    %556 = vmatpush1.msra.mxu0 0.0
    %557 = vmatprep.subr.mxu0 0.0
    %558 = vmatpush1.msra.mxu0 0.0
    %559 = vmatprep.subr.mxu0 0.0
    %560 = vmatpush1.msra.mxu0 0.0
    %561 = vmatprep.subr.mxu0 0.0
    %562 = vmatpush1.msra.mxu0 0.0
    %563 = vmatprep.subr.mxu0 0.0
    %564 = vmatpush1.msra.mxu0 0.0
    %565 = vmatprep.subr.mxu0 0.0
    %566 = vmatpush1.msra.mxu0 0.0
    %567 = vmatprep.subr.mxu0 0.0
    %568 = vmatpush1.msra.mxu0 0.0
    %569 = vmatprep.subr.mxu0 0.0
    %570 = vmatpush1.msra.mxu0 0.0
    %571 = vmatprep.subr.mxu0 0.0
    %572 = vmatpush1.msra.mxu0 0.0
    %573 = vmatprep.subr.mxu0 0.0
    %574 = vmatpush1.msra.mxu0 0.0
    %575 = vmatprep.subr.mxu0 0.0
    %576 = vmatpush1.msra.mxu0 0.0
    %577 = vmatprep.subr.mxu0 0.0
    %578 = vmatpush1.msra.mxu0 0.0
    %579 = vmatprep.subr.mxu0 0.0
    %580 = vmatpush1.msra.mxu0 0.0
    %581 = vmatprep.subr.mxu0 0.0
    %582 = vmatpush1.msra.mxu0 0.0
    %583 = vmatprep.subr.mxu0 0.0
    %584 = vmatpush1.msra.mxu0 0.0
    %585 = vmatprep.mubr.f32.mxu0 0.0
    %586 = vmatmul.mubr.f32.gmra.mrb[0].mxu0 %v51
    %v587 = vpop.f32.mrb[0].mxu0
    %v588 = vadd.f32 %v275, %v587
    %v589 = vpop.f32.mrb[0].mxu0
    %v590 = vadd.f32 %v279, %v589
    %591 = vdwg.mxu0
    %592 = vmatprep.subr.mxu0 %v61
    %593 = vmatpush1.msra.mxu0 %v60
    %594 = vmatprep.subr.mxu0 %v73
    %595 = vmatpush1.msra.mxu0 %v72
    %596 = vmatprep.subr.mxu0 %v85
    %597 = vmatpush1.msra.mxu0 %v84
    %598 = vmatprep.subr.mxu0 %v97
    %599 = vmatpush1.msra.mxu0 %v96
    %600 = vmatprep.subr.mxu0 %v109
    %601 = vmatpush1.msra.mxu0 %v108
    %602 = vmatprep.subr.mxu0 %v121
    %603 = vmatpush1.msra.mxu0 %v120
    %604 = vmatprep.subr.mxu0 %v133
    %605 = vmatpush1.msra.mxu0 %v132
    %606 = vmatprep.subr.mxu0 %v145
    %607 = vmatpush1.msra.mxu0 %v144
    %608 = vmatprep.subr.mxu0 %v157
    %609 = vmatpush1.msra.mxu0 %v156
    %610 = vmatprep.subr.mxu0 %v169
    %611 = vmatpush1.msra.mxu0 %v168
    %612 = vmatprep.subr.mxu0 %v181
    %613 = vmatpush1.msra.mxu0 %v180
    %614 = vmatprep.subr.mxu0 %v193
    %615 = vmatpush1.msra.mxu0 %v192
    %616 = vmatprep.subr.mxu0 %v205
    %617 = vmatpush1.msra.mxu0 %v204
    %618 = vmatprep.subr.mxu0 %v217
    %619 = vmatpush1.msra.mxu0 %v216
    %620 = vmatprep.subr.mxu0 %v229
    %621 = vmatpush1.msra.mxu0 %v228
    %622 = vmatprep.subr.mxu0 %v241
    %623 = vmatpush1.msra.mxu0 %v240
    %624 = vmatprep.subr.mxu0 0.0
    %625 = vmatpush1.msra.mxu0 0.0
    %626 = vmatprep.subr.mxu0 0.0
    %627 = vmatpush1.msra.mxu0 0.0
    %628 = vmatprep.subr.mxu0 0.0
    %629 = vmatpush1.msra.mxu0 0.0
    %630 = vmatprep.subr.mxu0 0.0
    %631 = vmatpush1.msra.mxu0 0.0
    %632 = vmatprep.subr.mxu0 0.0
    %633 = vmatpush1.msra.mxu0 0.0
    %634 = vmatprep.subr.mxu0 0.0
    %635 = vmatpush1.msra.mxu0 0.0
    %636 = vmatprep.subr.mxu0 0.0
    %637 = vmatpush1.msra.mxu0 0.0
    %638 = vmatprep.subr.mxu0 0.0
    %639 = vmatpush1.msra.mxu0 0.0
    %640 = vmatprep.subr.mxu0 0.0
    %641 = vmatpush1.msra.mxu0 0.0
    %642 = vmatprep.subr.mxu0 0.0
    %643 = vmatpush1.msra.mxu0 0.0
    %644 = vmatprep.subr.mxu0 0.0
    %645 = vmatpush1.msra.mxu0 0.0
    %646 = vmatprep.subr.mxu0 0.0
    %647 = vmatpush1.msra.mxu0 0.0
    %648 = vmatprep.subr.mxu0 0.0
    %649 = vmatpush1.msra.mxu0 0.0
    %650 = vmatprep.subr.mxu0 0.0
    %651 = vmatpush1.msra.mxu0 0.0
    %652 = vmatprep.subr.mxu0 0.0
    %653 = vmatpush1.msra.mxu0 0.0
    %654 = vmatprep.subr.mxu0 0.0
    %655 = vmatpush1.msra.mxu0 0.0
    %656 = vmatprep.mubr.f32.mxu0 0.0
    %657 = vmatmul.mubr.f32.gmra.mrb[0].mxu0 %v51
    %v658 = vpop.f32.mrb[0].mxu0
    %v659 = vadd.f32 %v283, %v658
    %v660 = vpop.f32.mrb[0].mxu0
    %v661 = vadd.f32 %v287, %v660
    %662 = vdwg.mxu0
    %663 = vmatprep.subr.mxu0 %v63
    %664 = vmatpush1.msra.mxu0 %v62
    %665 = vmatprep.subr.mxu0 %v75
    %666 = vmatpush1.msra.mxu0 %v74
    %667 = vmatprep.subr.mxu0 %v87
    %668 = vmatpush1.msra.mxu0 %v86
    %669 = vmatprep.subr.mxu0 %v99
    %670 = vmatpush1.msra.mxu0 %v98
    %671 = vmatprep.subr.mxu0 %v111
    %672 = vmatpush1.msra.mxu0 %v110
    %673 = vmatprep.subr.mxu0 %v123
    %674 = vmatpush1.msra.mxu0 %v122
    %675 = vmatprep.subr.mxu0 %v135
    %676 = vmatpush1.msra.mxu0 %v134
    %677 = vmatprep.subr.mxu0 %v147
    %678 = vmatpush1.msra.mxu0 %v146
    %679 = vmatprep.subr.mxu0 %v159
    %680 = vmatpush1.msra.mxu0 %v158
    %681 = vmatprep.subr.mxu0 %v171
    %682 = vmatpush1.msra.mxu0 %v170
    %683 = vmatprep.subr.mxu0 %v183
    %684 = vmatpush1.msra.mxu0 %v182
    %685 = vmatprep.subr.mxu0 %v195
    %686 = vmatpush1.msra.mxu0 %v194
    %687 = vmatprep.subr.mxu0 %v207
    %688 = vmatpush1.msra.mxu0 %v206
    %689 = vmatprep.subr.mxu0 %v219
    %690 = vmatpush1.msra.mxu0 %v218
    %691 = vmatprep.subr.mxu0 %v231
    %692 = vmatpush1.msra.mxu0 %v230
    %693 = vmatprep.subr.mxu0 %v243
    %694 = vmatpush1.msra.mxu0 %v242
    %695 = vmatprep.subr.mxu0 0.0
    %696 = vmatpush1.msra.mxu0 0.0
    %697 = vmatprep.subr.mxu0 0.0
    %698 = vmatpush1.msra.mxu0 0.0
    %699 = vmatprep.subr.mxu0 0.0
    %700 = vmatpush1.msra.mxu0 0.0
    %701 = vmatprep.subr.mxu0 0.0
    %702 = vmatpush1.msra.mxu0 0.0
    %703 = vmatprep.subr.mxu0 0.0
    %704 = vmatpush1.msra.mxu0 0.0
    %705 = vmatprep.subr.mxu0 0.0
    %706 = vmatpush1.msra.mxu0 0.0
    %707 = vmatprep.subr.mxu0 0.0
    %708 = vmatpush1.msra.mxu0 0.0
    %709 = vmatprep.subr.mxu0 0.0
    %710 = vmatpush1.msra.mxu0 0.0
    %711 = vmatprep.subr.mxu0 0.0
    %712 = vmatpush1.msra.mxu0 0.0
    %713 = vmatprep.subr.mxu0 0.0
    %714 = vmatpush1.msra.mxu0 0.0
    %715 = vmatprep.subr.mxu0 0.0
    %716 = vmatpush1.msra.mxu0 0.0
    %717 = vmatprep.subr.mxu0 0.0
    %718 = vmatpush1.msra.mxu0 0.0
    %719 = vmatprep.subr.mxu0 0.0
    %720 = vmatpush1.msra.mxu0 0.0
    %721 = vmatprep.subr.mxu0 0.0
    %722 = vmatpush1.msra.mxu0 0.0
    %723 = vmatprep.subr.mxu0 0.0
    %724 = vmatpush1.msra.mxu0 0.0
    %725 = vmatprep.subr.mxu0 0.0
    %726 = vmatpush1.msra.mxu0 0.0
    %727 = vmatprep.mubr.f32.mxu0 0.0
    %728 = vmatmul.mubr.f32.gmra.mrb[0].mxu0 %v51
    %v729 = vpop.f32.mrb[0].mxu0
    %v730 = vadd.f32 %v291, %v729
    %v731 = vpop.f32.mrb[0].mxu0
    %v732 = vadd.f32 %v295, %v731
    %733 = vdwg.mxu0
    %v734 = vld [vmem:[#allocation4] sm:$0xff]
    %v735 = vld [vmem:[#allocation4 + $0x8] sm:$0xff]
    %v736 = vld [vmem:[#allocation4 + $0x10] sm:$0xff]
    %v737 = vld [vmem:[#allocation4 + $0x18] sm:$0xff]
    %v738 = vld [vmem:[#allocation4 + $0x20] sm:$0xff]
    %v739 = vld [vmem:[#allocation4 + $0x28] sm:$0xff]
    %v740 = vld [vmem:[#allocation4 + $0x30] sm:$0xff]
    %v741 = vld [vmem:[#allocation4 + $0x38] sm:$0xff]
    %v742 = vld [vmem:[#allocation4 + $0x40] sm:$0xff]
    %v743 = vld [vmem:[#allocation4 + $0x48] sm:$0xff]
    %v744 = vld [vmem:[#allocation4 + $0x50] sm:$0xff]
    %v745 = vld [vmem:[#allocation4 + $0x58] sm:$0xff]
    %v746 = vld [vmem:[#allocation4 + $0x60] sm:$0xff]
    %v747 = vld [vmem:[#allocation4 + $0x68] sm:$0xff]
    %v748 = vld [vmem:[#allocation4 + $0x70] sm:$0xff]
    %v749 = vld [vmem:[#allocation4 + $0x78] sm:$0xff]
    %v750 = vld [vmem:[#allocation4 + $0x80] sm:$0xff]
    %v751 = vld [vmem:[#allocation4 + $0x88] sm:$0xff]
    %v752 = vld [vmem:[#allocation4 + $0x90] sm:$0xff]
    %v753 = vld [vmem:[#allocation4 + $0x98] sm:$0xff]
    %v754 = vld [vmem:[#allocation4 + $0xa0] sm:$0xff]
    %v755 = vld [vmem:[#allocation4 + $0xa8] sm:$0xff]
    %v756 = vld [vmem:[#allocation4 + $0xb0] sm:$0xff]
    %v757 = vld [vmem:[#allocation4 + $0xb8] sm:$0xff]
    %v758 = vld [vmem:[#allocation4 + $0xc0] sm:$0xff]
    %v759 = vld [vmem:[#allocation4 + $0xc8] sm:$0xff]
    %v760 = vld [vmem:[#allocation4 + $0xd0] sm:$0xff]
    %v761 = vld [vmem:[#allocation4 + $0xd8] sm:$0xff]
    %v762 = vld [vmem:[#allocation4 + $0xe0] sm:$0xff]
    %v763 = vld [vmem:[#allocation4 + $0xe8] sm:$0xff]
    %v764 = vld [vmem:[#allocation4 + $0xf0] sm:$0xff]
    %v765 = vld [vmem:[#allocation4 + $0xf8] sm:$0xff]
    %v766 = vld [vmem:[#allocation4 + $0x100] sm:$0xff]
    %v767 = vld [vmem:[#allocation4 + $0x108] sm:$0xff]
    %v768 = vld [vmem:[#allocation4 + $0x110] sm:$0xff]
    %v769 = vld [vmem:[#allocation4 + $0x118] sm:$0xff]
    %v770 = vld [vmem:[#allocation4 + $0x120] sm:$0xff]
    %v771 = vld [vmem:[#allocation4 + $0x128] sm:$0xff]
    %v772 = vld [vmem:[#allocation4 + $0x130] sm:$0xff]
    %v773 = vld [vmem:[#allocation4 + $0x138] sm:$0xff]
    %v774 = vld [vmem:[#allocation4 + $0x140] sm:$0xff]
    %v775 = vld [vmem:[#allocation4 + $0x148] sm:$0xff]
    %v776 = vld [vmem:[#allocation4 + $0x150] sm:$0xff]
    %v777 = vld [vmem:[#allocation4 + $0x158] sm:$0xff]
    %v778 = vld [vmem:[#allocation4 + $0x160] sm:$0xff]
    %v779 = vld [vmem:[#allocation4 + $0x168] sm:$0xff]
    %v780 = vld [vmem:[#allocation4 + $0x170] sm:$0xff]
    %v781 = vld [vmem:[#allocation4 + $0x178] sm:$0xff]
    %v782 = vld [vmem:[#allocation4 + $0x180] sm:$0xff]
    %v783 = vld [vmem:[#allocation4 + $0x188] sm:$0xff]
    %v784 = vld [vmem:[#allocation4 + $0x190] sm:$0xff]
    %v785 = vld [vmem:[#allocation4 + $0x198] sm:$0xff]
    %v786 = vld [vmem:[#allocation4 + $0x1a0] sm:$0xff]
    %v787 = vld [vmem:[#allocation4 + $0x1a8] sm:$0xff]
    %v788 = vld [vmem:[#allocation4 + $0x1b0] sm:$0xff]
    %v789 = vld [vmem:[#allocation4 + $0x1b8] sm:$0xff]
    %v790 = vld [vmem:[#allocation4 + $0x1c0] sm:$0xff]
    %v791 = vld [vmem:[#allocation4 + $0x1c8] sm:$0xff]
    %v792 = vld [vmem:[#allocation4 + $0x1d0] sm:$0xff]
    %v793 = vld [vmem:[#allocation4 + $0x1d8] sm:$0xff]
    %v794 = vld [vmem:[#allocation4 + $0x1e0] sm:$0xff]
    %v795 = vld [vmem:[#allocation4 + $0x1e8] sm:$0xff]
    %v796 = vld [vmem:[#allocation4 + $0x1f0] sm:$0xff]
    %v797 = vld [vmem:[#allocation4 + $0x1f8] sm:$0xff]
    %v798 = vld [vmem:[#allocation4 + $0x200] sm:$0xff]
    %v799 = vld [vmem:[#allocation4 + $0x208] sm:$0xff]
    %v800 = vld [vmem:[#allocation4 + $0x210] sm:$0xff]
    %v801 = vld [vmem:[#allocation4 + $0x218] sm:$0xff]
    %v802 = vld [vmem:[#allocation4 + $0x220] sm:$0xff]
    %v803 = vld [vmem:[#allocation4 + $0x228] sm:$0xff]
    %v804 = vld [vmem:[#allocation4 + $0x230] sm:$0xff]
    %v805 = vld [vmem:[#allocation4 + $0x238] sm:$0xff]
    %v806 = vld [vmem:[#allocation4 + $0x240] sm:$0xff]
    %v807 = vld [vmem:[#allocation4 + $0x248] sm:$0xff]
    %v808 = vld [vmem:[#allocation4 + $0x250] sm:$0xff]
    %v809 = vld [vmem:[#allocation4 + $0x258] sm:$0xff]
    %v810 = vld [vmem:[#allocation4 + $0x260] sm:$0xff]
    %v811 = vld [vmem:[#allocation4 + $0x268] sm:$0xff]
    %v812 = vld [vmem:[#allocation4 + $0x270] sm:$0xff]
    %v813 = vld [vmem:[#allocation4 + $0x278] sm:$0xff]
    %v814 = vld [vmem:[#allocation4 + $0x280] sm:$0xff]
    %v815 = vld [vmem:[#allocation4 + $0x288] sm:$0xff]
    %v816 = vld [vmem:[#allocation4 + $0x290] sm:$0xff]
    %v817 = vld [vmem:[#allocation4 + $0x298] sm:$0xff]
    %v818 = vld [vmem:[#allocation4 + $0x2a0] sm:$0xff]
    %v819 = vld [vmem:[#allocation4 + $0x2a8] sm:$0xff]
    %v820 = vld [vmem:[#allocation4 + $0x2b0] sm:$0xff]
    %v821 = vld [vmem:[#allocation4 + $0x2b8] sm:$0xff]
    %v822 = vld [vmem:[#allocation4 + $0x2c0] sm:$0xff]
    %v823 = vld [vmem:[#allocation4 + $0x2c8] sm:$0xff]
    %v824 = vld [vmem:[#allocation4 + $0x2d0] sm:$0xff]
    %v825 = vld [vmem:[#allocation4 + $0x2d8] sm:$0xff]
    %v826 = vld [vmem:[#allocation4 + $0x2e0] sm:$0xff]
    %v827 = vld [vmem:[#allocation4 + $0x2e8] sm:$0xff]
    %v828 = vld [vmem:[#allocation4 + $0x2f0] sm:$0xff]
    %v829 = vld [vmem:[#allocation4 + $0x2f8] sm:$0xff]
    %v830 = vld [vmem:[#allocation4 + $0x300] sm:$0xff]
    %v831 = vld [vmem:[#allocation4 + $0x308] sm:$0xff]
    %v832 = vld [vmem:[#allocation4 + $0x310] sm:$0xff]
    %v833 = vld [vmem:[#allocation4 + $0x318] sm:$0xff]
    %v834 = vld [vmem:[#allocation4 + $0x320] sm:$0xff]
    %v835 = vld [vmem:[#allocation4 + $0x328] sm:$0xff]
    %v836 = vld [vmem:[#allocation4 + $0x330] sm:$0xff]
    %v837 = vld [vmem:[#allocation4 + $0x338] sm:$0xff]
    %v838 = vld [vmem:[#allocation4 + $0x340] sm:$0xff]
    %v839 = vld [vmem:[#allocation4 + $0x348] sm:$0xff]
    %v840 = vld [vmem:[#allocation4 + $0x350] sm:$0xff]
    %v841 = vld [vmem:[#allocation4 + $0x358] sm:$0xff]
    %v842 = vld [vmem:[#allocation4 + $0x360] sm:$0xff]
    %v843 = vld [vmem:[#allocation4 + $0x368] sm:$0xff]
    %v844 = vld [vmem:[#allocation4 + $0x370] sm:$0xff]
    %v845 = vld [vmem:[#allocation4 + $0x378] sm:$0xff]
    %v846 = vld [vmem:[#allocation4 + $0x380] sm:$0xff]
    %v847 = vld [vmem:[#allocation4 + $0x388] sm:$0xff]
    %v848 = vld [vmem:[#allocation4 + $0x390] sm:$0xff]
    %v849 = vld [vmem:[#allocation4 + $0x398] sm:$0xff]
    %v850 = vld [vmem:[#allocation4 + $0x3a0] sm:$0xff]
    %v851 = vld [vmem:[#allocation4 + $0x3a8] sm:$0xff]
    %v852 = vld [vmem:[#allocation4 + $0x3b0] sm:$0xff]
    %v853 = vld [vmem:[#allocation4 + $0x3b8] sm:$0xff]
    %v854 = vld [vmem:[#allocation4 + $0x3c0] sm:$0xff]
    %v855 = vld [vmem:[#allocation4 + $0x3c8] sm:$0xff]
    %v856 = vld [vmem:[#allocation4 + $0x3d0] sm:$0xff]
    %v857 = vld [vmem:[#allocation4 + $0x3d8] sm:$0xff]
    %v858 = vld [vmem:[#allocation4 + $0x3e0] sm:$0xff]
    %v859 = vld [vmem:[#allocation4 + $0x3e8] sm:$0xff]
    %v860 = vld [vmem:[#allocation4 + $0x3f0] sm:$0xff]
    %v861 = vld [vmem:[#allocation4 + $0x3f8] sm:$0xff]
    %v862 = vld [vmem:[#allocation4 + $0x400] sm:$0xff]
    %v863 = vld [vmem:[#allocation4 + $0x408] sm:$0xff]
    %v864 = vld [vmem:[#allocation4 + $0x410] sm:$0xff]
    %v865 = vld [vmem:[#allocation4 + $0x418] sm:$0xff]
    %v866 = vld [vmem:[#allocation4 + $0x420] sm:$0xff]
    %v867 = vld [vmem:[#allocation4 + $0x428] sm:$0xff]
    %v868 = vld [vmem:[#allocation4 + $0x430] sm:$0xff]
    %v869 = vld [vmem:[#allocation4 + $0x438] sm:$0xff]
    %v870 = vld [vmem:[#allocation4 + $0x440] sm:$0xff]
    %v871 = vld [vmem:[#allocation4 + $0x448] sm:$0xff]
    %v872 = vld [vmem:[#allocation4 + $0x450] sm:$0xff]
    %v873 = vld [vmem:[#allocation4 + $0x458] sm:$0xff]
    %v874 = vld [vmem:[#allocation4 + $0x460] sm:$0xff]
    %v875 = vld [vmem:[#allocation4 + $0x468] sm:$0xff]
    %v876 = vld [vmem:[#allocation4 + $0x470] sm:$0xff]
    %v877 = vld [vmem:[#allocation4 + $0x478] sm:$0xff]
    %v878 = vld [vmem:[#allocation4 + $0x480] sm:$0xff]
    %v879 = vld [vmem:[#allocation4 + $0x488] sm:$0xff]
    %v880 = vld [vmem:[#allocation4 + $0x490] sm:$0xff]
    %v881 = vld [vmem:[#allocation4 + $0x498] sm:$0xff]
    %v882 = vld [vmem:[#allocation4 + $0x4a0] sm:$0xff]
    %v883 = vld [vmem:[#allocation4 + $0x4a8] sm:$0xff]
    %v884 = vld [vmem:[#allocation4 + $0x4b0] sm:$0xff]
    %v885 = vld [vmem:[#allocation4 + $0x4b8] sm:$0xff]
    %v886 = vld [vmem:[#allocation4 + $0x4c0] sm:$0xff]
    %v887 = vld [vmem:[#allocation4 + $0x4c8] sm:$0xff]
    %v888 = vld [vmem:[#allocation4 + $0x4d0] sm:$0xff]
    %v889 = vld [vmem:[#allocation4 + $0x4d8] sm:$0xff]
    %v890 = vld [vmem:[#allocation4 + $0x4e0] sm:$0xff]
    %v891 = vld [vmem:[#allocation4 + $0x4e8] sm:$0xff]
    %v892 = vld [vmem:[#allocation4 + $0x4f0] sm:$0xff]
    %v893 = vld [vmem:[#allocation4 + $0x4f8] sm:$0xff]
    %v894 = vld [vmem:[#allocation4 + $0x500] sm:$0xff]
    %v895 = vld [vmem:[#allocation4 + $0x508] sm:$0xff]
    %v896 = vld [vmem:[#allocation4 + $0x510] sm:$0xff]
    %v897 = vld [vmem:[#allocation4 + $0x518] sm:$0xff]
    %v898 = vld [vmem:[#allocation4 + $0x520] sm:$0xff]
    %v899 = vld [vmem:[#allocation4 + $0x528] sm:$0xff]
    %v900 = vld [vmem:[#allocation4 + $0x530] sm:$0xff]
    %v901 = vld [vmem:[#allocation4 + $0x538] sm:$0xff]
    %v902 = vld [vmem:[#allocation4 + $0x540] sm:$0xff]
    %v903 = vld [vmem:[#allocation4 + $0x548] sm:$0xff]
    %v904 = vld [vmem:[#allocation4 + $0x550] sm:$0xff]
    %v905 = vld [vmem:[#allocation4 + $0x558] sm:$0xff]
    %v906 = vld [vmem:[#allocation4 + $0x560] sm:$0xff]
    %v907 = vld [vmem:[#allocation4 + $0x568] sm:$0xff]
    %v908 = vld [vmem:[#allocation4 + $0x570] sm:$0xff]
    %v909 = vld [vmem:[#allocation4 + $0x578] sm:$0xff]
    %v910 = vld [vmem:[#allocation4 + $0x580] sm:$0xff]
    %v911 = vld [vmem:[#allocation4 + $0x588] sm:$0xff]
    %v912 = vld [vmem:[#allocation4 + $0x590] sm:$0xff]
    %v913 = vld [vmem:[#allocation4 + $0x598] sm:$0xff]
    %v914 = vld [vmem:[#allocation4 + $0x5a0] sm:$0xff]
    %v915 = vld [vmem:[#allocation4 + $0x5a8] sm:$0xff]
    %v916 = vld [vmem:[#allocation4 + $0x5b0] sm:$0xff]
    %v917 = vld [vmem:[#allocation4 + $0x5b8] sm:$0xff]
    %v918 = vld [vmem:[#allocation4 + $0x5c0] sm:$0xff]
    %v919 = vld [vmem:[#allocation4 + $0x5c8] sm:$0xff]
    %v920 = vld [vmem:[#allocation4 + $0x5d0] sm:$0xff]
    %v921 = vld [vmem:[#allocation4 + $0x5d8] sm:$0xff]
    %v922 = vld [vmem:[#allocation4 + $0x5e0] sm:$0xff]
    %v923 = vld [vmem:[#allocation4 + $0x5e8] sm:$0xff]
    %v924 = vld [vmem:[#allocation4 + $0x5f0] sm:$0xff]
    %v925 = vld [vmem:[#allocation4 + $0x5f8] sm:$0xff]
    %v926 = vld [vmem:[#allocation4 + $0x600] sm:$0xff]
    %v927 = vld [vmem:[#allocation4 + $0x608] sm:$0xff]
    %v928 = vld [vmem:[#allocation4 + $0x610] sm:$0xff]
    %v929 = vld [vmem:[#allocation4 + $0x618] sm:$0xff]
    %v930 = vld [vmem:[#allocation4 + $0x620] sm:$0xff]
    %v931 = vld [vmem:[#allocation4 + $0x628] sm:$0xff]
    %v932 = vld [vmem:[#allocation4 + $0x630] sm:$0xff]
    %v933 = vld [vmem:[#allocation4 + $0x638] sm:$0xff]
    %v934 = vld [vmem:[#allocation4 + $0x640] sm:$0xff]
    %v935 = vld [vmem:[#allocation4 + $0x648] sm:$0xff]
    %v936 = vld [vmem:[#allocation4 + $0x650] sm:$0xff]
    %v937 = vld [vmem:[#allocation4 + $0x658] sm:$0xff]
    %v938 = vld [vmem:[#allocation4 + $0x660] sm:$0xff]
    %v939 = vld [vmem:[#allocation4 + $0x668] sm:$0xff]
    %v940 = vld [vmem:[#allocation4 + $0x670] sm:$0xff]
    %v941 = vld [vmem:[#allocation4 + $0x678] sm:$0xff]
    %v942 = vld [vmem:[#allocation4 + $0x680] sm:$0xff]
    %v943 = vld [vmem:[#allocation4 + $0x688] sm:$0xff]
    %v944 = vld [vmem:[#allocation4 + $0x690] sm:$0xff]
    %v945 = vld [vmem:[#allocation4 + $0x698] sm:$0xff]
    %v946 = vld [vmem:[#allocation4 + $0x6a0] sm:$0xff]
    %v947 = vld [vmem:[#allocation4 + $0x6a8] sm:$0xff]
    %v948 = vld [vmem:[#allocation4 + $0x6b0] sm:$0xff]
    %v949 = vld [vmem:[#allocation4 + $0x6b8] sm:$0xff]
    %v950 = vld [vmem:[#allocation4 + $0x6c0] sm:$0xff]
    %v951 = vld [vmem:[#allocation4 + $0x6c8] sm:$0xff]
    %v952 = vld [vmem:[#allocation4 + $0x6d0] sm:$0xff]
    %v953 = vld [vmem:[#allocation4 + $0x6d8] sm:$0xff]
    %v954 = vld [vmem:[#allocation4 + $0x6e0] sm:$0xff]
    %v955 = vld [vmem:[#allocation4 + $0x6e8] sm:$0xff]
    %v956 = vld [vmem:[#allocation4 + $0x6f0] sm:$0xff]
    %v957 = vld [vmem:[#allocation4 + $0x6f8] sm:$0xff]
    %v958 = vld [vmem:[#allocation4 + $0x700] sm:$0xff]
    %v959 = vld [vmem:[#allocation4 + $0x708] sm:$0xff]
    %v960 = vld [vmem:[#allocation4 + $0x710] sm:$0xff]
    %v961 = vld [vmem:[#allocation4 + $0x718] sm:$0xff]
    %v962 = vld [vmem:[#allocation4 + $0x720] sm:$0xff]
    %v963 = vld [vmem:[#allocation4 + $0x728] sm:$0xff]
    %v964 = vld [vmem:[#allocation4 + $0x730] sm:$0xff]
    %v965 = vld [vmem:[#allocation4 + $0x738] sm:$0xff]
    %v966 = vld [vmem:[#allocation4 + $0x740] sm:$0xff]
    %v967 = vld [vmem:[#allocation4 + $0x748] sm:$0xff]
    %v968 = vld [vmem:[#allocation4 + $0x750] sm:$0xff]
    %v969 = vld [vmem:[#allocation4 + $0x758] sm:$0xff]
    %v970 = vld [vmem:[#allocation4 + $0x760] sm:$0xff]
    %v971 = vld [vmem:[#allocation4 + $0x768] sm:$0xff]
    %v972 = vld [vmem:[#allocation4 + $0x770] sm:$0xff]
    %v973 = vld [vmem:[#allocation4 + $0x778] sm:$0xff]
    %v974 = vld [vmem:[#allocation4 + $0x780] sm:$0xff]
    %v975 = vld [vmem:[#allocation4 + $0x788] sm:$0xff]
    %v976 = vld [vmem:[#allocation4 + $0x790] sm:$0xff]
    %v977 = vld [vmem:[#allocation4 + $0x798] sm:$0xff]
    %v978 = vld [vmem:[#allocation4 + $0x7a0] sm:$0xff]
    %v979 = vld [vmem:[#allocation4 + $0x7a8] sm:$0xff]
    %v980 = vld [vmem:[#allocation4 + $0x7b0] sm:$0xff]
    %v981 = vld [vmem:[#allocation4 + $0x7b8] sm:$0xff]
    %v982 = vld [vmem:[#allocation4 + $0x7c0] sm:$0xff]
    %v983 = vld [vmem:[#allocation4 + $0x7c8] sm:$0xff]
    %v984 = vld [vmem:[#allocation4 + $0x7d0] sm:$0xff]
    %v985 = vld [vmem:[#allocation4 + $0x7d8] sm:$0xff]
    %v986 = vld [vmem:[#allocation4 + $0x7e0] sm:$0xff]
    %v987 = vld [vmem:[#allocation4 + $0x7e8] sm:$0xff]
    %v988 = vld [vmem:[#allocation4 + $0x7f0] sm:$0xff]
    %v989 = vld [vmem:[#allocation4 + $0x7f8] sm:$0xff]
    %v990 = vld [vmem:[%s4] sm:$0x3]
    %v991 = vld [vmem:[%s5] sm:$0x3]
    %992 = vmatprep.subr.mxu0 %v735
    %993 = vmatpush1.msra.mxu0 %v734
    %994 = vmatprep.subr.mxu0 %v737
    %995 = vmatpush1.msra.mxu0 %v736
    %996 = vmatprep.subr.mxu0 %v739
    %997 = vmatpush1.msra.mxu0 %v738
    %998 = vmatprep.subr.mxu0 %v741
    %999 = vmatpush1.msra.mxu0 %v740
    %1000 = vmatprep.subr.mxu0 %v743
    %1001 = vmatpush1.msra.mxu0 %v742
    %1002 = vmatprep.subr.mxu0 %v745
    %1003 = vmatpush1.msra.mxu0 %v744
    %1004 = vmatprep.subr.mxu0 %v747
    %1005 = vmatpush1.msra.mxu0 %v746
    %1006 = vmatprep.subr.mxu0 %v749
    %1007 = vmatpush1.msra.mxu0 %v748
    %1008 = vmatprep.subr.mxu0 %v751
    %1009 = vmatpush1.msra.mxu0 %v750
    %1010 = vmatprep.subr.mxu0 %v753
    %1011 = vmatpush1.msra.mxu0 %v752
    %1012 = vmatprep.subr.mxu0 %v755
    %1013 = vmatpush1.msra.mxu0 %v754
    %1014 = vmatprep.subr.mxu0 %v757
    %1015 = vmatpush1.msra.mxu0 %v756
    %1016 = vmatprep.subr.mxu0 %v759
    %1017 = vmatpush1.msra.mxu0 %v758
    %1018 = vmatprep.subr.mxu0 %v761
    %1019 = vmatpush1.msra.mxu0 %v760
    %1020 = vmatprep.subr.mxu0 %v763
    %1021 = vmatpush1.msra.mxu0 %v762
    %1022 = vmatprep.subr.mxu0 %v765
    %1023 = vmatpush1.msra.mxu0 %v764
    %1024 = vmatprep.subr.mxu0 %v767
    %1025 = vmatpush1.msra.mxu0 %v766
    %1026 = vmatprep.subr.mxu0 %v769
    %1027 = vmatpush1.msra.mxu0 %v768
    %1028 = vmatprep.subr.mxu0 %v771
    %1029 = vmatpush1.msra.mxu0 %v770
    %1030 = vmatprep.subr.mxu0 %v773
    %1031 = vmatpush1.msra.mxu0 %v772
    %1032 = vmatprep.subr.mxu0 %v775
    %1033 = vmatpush1.msra.mxu0 %v774
    %1034 = vmatprep.subr.mxu0 %v777
    %1035 = vmatpush1.msra.mxu0 %v776
    %1036 = vmatprep.subr.mxu0 %v779
    %1037 = vmatpush1.msra.mxu0 %v778
    %1038 = vmatprep.subr.mxu0 %v781
    %1039 = vmatpush1.msra.mxu0 %v780
    %1040 = vmatprep.subr.mxu0 %v783
    %1041 = vmatpush1.msra.mxu0 %v782
    %1042 = vmatprep.subr.mxu0 %v785
    %1043 = vmatpush1.msra.mxu0 %v784
    %1044 = vmatprep.subr.mxu0 %v787
    %1045 = vmatpush1.msra.mxu0 %v786
    %1046 = vmatprep.subr.mxu0 %v789
    %1047 = vmatpush1.msra.mxu0 %v788
    %1048 = vmatprep.subr.mxu0 %v791
    %1049 = vmatpush1.msra.mxu0 %v790
    %1050 = vmatprep.subr.mxu0 %v793
    %1051 = vmatpush1.msra.mxu0 %v792
    %1052 = vmatprep.subr.mxu0 %v795
    %1053 = vmatpush1.msra.mxu0 %v794
    %1054 = vmatprep.subr.mxu0 %v797
    %1055 = vmatpush1.msra.mxu0 %v796
    %1056 = vmatprep.mubr.f32.mxu0 %v377
    %1057 = vmatmul.mubr.f32.gmra.mrb[0].mxu0 %v375
    %v1058 = vpop.f32.mrb[0].mxu0
    %v1059 = vadd.f32 0.0, %v1058
    %v1060 = vpop.f32.mrb[0].mxu0
    %v1061 = vadd.f32 0.0, %v1060
    %1062 = vdwg.mxu0
    %1063 = vmatprep.subr.mxu0 %v799
    %1064 = vmatpush1.msra.mxu0 %v798
    %1065 = vmatprep.subr.mxu0 %v801
    %1066 = vmatpush1.msra.mxu0 %v800
    %1067 = vmatprep.subr.mxu0 %v803
    %1068 = vmatpush1.msra.mxu0 %v802
    %1069 = vmatprep.subr.mxu0 %v805
    %1070 = vmatpush1.msra.mxu0 %v804
    %1071 = vmatprep.subr.mxu0 %v807
    %1072 = vmatpush1.msra.mxu0 %v806
    %1073 = vmatprep.subr.mxu0 %v809
    %1074 = vmatpush1.msra.mxu0 %v808
    %1075 = vmatprep.subr.mxu0 %v811
    %1076 = vmatpush1.msra.mxu0 %v810
    %1077 = vmatprep.subr.mxu0 %v813
    %1078 = vmatpush1.msra.mxu0 %v812
    %1079 = vmatprep.subr.mxu0 %v815
    %1080 = vmatpush1.msra.mxu0 %v814
    %1081 = vmatprep.subr.mxu0 %v817
    %1082 = vmatpush1.msra.mxu0 %v816
    %1083 = vmatprep.subr.mxu0 %v819
    %1084 = vmatpush1.msra.mxu0 %v818
    %1085 = vmatprep.subr.mxu0 %v821
    %1086 = vmatpush1.msra.mxu0 %v820
    %1087 = vmatprep.subr.mxu0 %v823
    %1088 = vmatpush1.msra.mxu0 %v822
    %1089 = vmatprep.subr.mxu0 %v825
    %1090 = vmatpush1.msra.mxu0 %v824
    %1091 = vmatprep.subr.mxu0 %v827
    %1092 = vmatpush1.msra.mxu0 %v826
    %1093 = vmatprep.subr.mxu0 %v829
    %1094 = vmatpush1.msra.mxu0 %v828
    %1095 = vmatprep.subr.mxu0 %v831
    %1096 = vmatpush1.msra.mxu0 %v830
    %1097 = vmatprep.subr.mxu0 %v833
    %1098 = vmatpush1.msra.mxu0 %v832
    %1099 = vmatprep.subr.mxu0 %v835
    %1100 = vmatpush1.msra.mxu0 %v834
    %1101 = vmatprep.subr.mxu0 %v837
    %1102 = vmatpush1.msra.mxu0 %v836
    %1103 = vmatprep.subr.mxu0 %v839
    %1104 = vmatpush1.msra.mxu0 %v838
    %1105 = vmatprep.subr.mxu0 %v841
    %1106 = vmatpush1.msra.mxu0 %v840
    %1107 = vmatprep.subr.mxu0 %v843
    %1108 = vmatpush1.msra.mxu0 %v842
    %1109 = vmatprep.subr.mxu0 %v845
    %1110 = vmatpush1.msra.mxu0 %v844
    %1111 = vmatprep.subr.mxu0 %v847
    %1112 = vmatpush1.msra.mxu0 %v846
    %1113 = vmatprep.subr.mxu0 %v849
    %1114 = vmatpush1.msra.mxu0 %v848
    %1115 = vmatprep.subr.mxu0 %v851
    %1116 = vmatpush1.msra.mxu0 %v850
    %1117 = vmatprep.subr.mxu0 %v853
    %1118 = vmatpush1.msra.mxu0 %v852
    %1119 = vmatprep.subr.mxu0 %v855
    %1120 = vmatpush1.msra.mxu0 %v854
    %1121 = vmatprep.subr.mxu0 %v857
    %1122 = vmatpush1.msra.mxu0 %v856
    %1123 = vmatprep.subr.mxu0 %v859
    %1124 = vmatpush1.msra.mxu0 %v858
    %1125 = vmatprep.subr.mxu0 %v861
    %1126 = vmatpush1.msra.mxu0 %v860
    %1127 = vmatprep.mubr.f32.mxu0 %v448
    %1128 = vmatmul.mubr.f32.gmra.mrb[0].mxu0 %v446
    %v1129 = vpop.f32.mrb[0].mxu0
    %v1130 = vadd.f32 %v1059, %v1129
    %v1131 = vpop.f32.mrb[0].mxu0
    %v1132 = vadd.f32 %v1061, %v1131
    %1133 = vdwg.mxu0
    %1134 = vmatprep.subr.mxu0 %v863
    %1135 = vmatpush1.msra.mxu0 %v862
    %1136 = vmatprep.subr.mxu0 %v865
    %1137 = vmatpush1.msra.mxu0 %v864
    %1138 = vmatprep.subr.mxu0 %v867
    %1139 = vmatpush1.msra.mxu0 %v866
    %1140 = vmatprep.subr.mxu0 %v869
    %1141 = vmatpush1.msra.mxu0 %v868
    %1142 = vmatprep.subr.mxu0 %v871
    %1143 = vmatpush1.msra.mxu0 %v870
    %1144 = vmatprep.subr.mxu0 %v873
    %1145 = vmatpush1.msra.mxu0 %v872
    %1146 = vmatprep.subr.mxu0 %v875
    %1147 = vmatpush1.msra.mxu0 %v874
    %1148 = vmatprep.subr.mxu0 %v877
    %1149 = vmatpush1.msra.mxu0 %v876
    %1150 = vmatprep.subr.mxu0 %v879
    %1151 = vmatpush1.msra.mxu0 %v878
    %1152 = vmatprep.subr.mxu0 %v881
    %1153 = vmatpush1.msra.mxu0 %v880
    %1154 = vmatprep.subr.mxu0 %v883
    %1155 = vmatpush1.msra.mxu0 %v882
    %1156 = vmatprep.subr.mxu0 %v885
    %1157 = vmatpush1.msra.mxu0 %v884
    %1158 = vmatprep.subr.mxu0 %v887
    %1159 = vmatpush1.msra.mxu0 %v886
    %1160 = vmatprep.subr.mxu0 %v889
    %1161 = vmatpush1.msra.mxu0 %v888
    %1162 = vmatprep.subr.mxu0 %v891
    %1163 = vmatpush1.msra.mxu0 %v890
    %1164 = vmatprep.subr.mxu0 %v893
    %1165 = vmatpush1.msra.mxu0 %v892
    %1166 = vmatprep.subr.mxu0 %v895
    %1167 = vmatpush1.msra.mxu0 %v894
    %1168 = vmatprep.subr.mxu0 %v897
    %1169 = vmatpush1.msra.mxu0 %v896
    %1170 = vmatprep.subr.mxu0 %v899
    %1171 = vmatpush1.msra.mxu0 %v898
    %1172 = vmatprep.subr.mxu0 %v901
    %1173 = vmatpush1.msra.mxu0 %v900
    %1174 = vmatprep.subr.mxu0 %v903
    %1175 = vmatpush1.msra.mxu0 %v902
    %1176 = vmatprep.subr.mxu0 %v905
    %1177 = vmatpush1.msra.mxu0 %v904
    %1178 = vmatprep.subr.mxu0 %v907
    %1179 = vmatpush1.msra.mxu0 %v906
    %1180 = vmatprep.subr.mxu0 %v909
    %1181 = vmatpush1.msra.mxu0 %v908
    %1182 = vmatprep.subr.mxu0 %v911
    %1183 = vmatpush1.msra.mxu0 %v910
    %1184 = vmatprep.subr.mxu0 %v913
    %1185 = vmatpush1.msra.mxu0 %v912
    %1186 = vmatprep.subr.mxu0 %v915
    %1187 = vmatpush1.msra.mxu0 %v914
    %1188 = vmatprep.subr.mxu0 %v917
    %1189 = vmatpush1.msra.mxu0 %v916
    %1190 = vmatprep.subr.mxu0 %v919
    %1191 = vmatpush1.msra.mxu0 %v918
    %1192 = vmatprep.subr.mxu0 %v921
    %1193 = vmatpush1.msra.mxu0 %v920
    %1194 = vmatprep.subr.mxu0 %v923
    %1195 = vmatpush1.msra.mxu0 %v922
    %1196 = vmatprep.subr.mxu0 %v925
    %1197 = vmatpush1.msra.mxu0 %v924
    %1198 = vmatprep.mubr.f32.mxu0 %v519
    %1199 = vmatmul.mubr.f32.gmra.mrb[0].mxu0 %v517
    %v1200 = vpop.f32.mrb[0].mxu0
    %v1201 = vadd.f32 %v1130, %v1200
    %v1202 = vpop.f32.mrb[0].mxu0
    %v1203 = vadd.f32 %v1132, %v1202
    %1204 = vdwg.mxu0
    %1205 = vmatprep.subr.mxu0 %v927
    %1206 = vmatpush1.msra.mxu0 %v926
    %1207 = vmatprep.subr.mxu0 %v929
    %1208 = vmatpush1.msra.mxu0 %v928
    %1209 = vmatprep.subr.mxu0 %v931
    %1210 = vmatpush1.msra.mxu0 %v930
    %1211 = vmatprep.subr.mxu0 %v933
    %1212 = vmatpush1.msra.mxu0 %v932
    %1213 = vmatprep.subr.mxu0 %v935
    %1214 = vmatpush1.msra.mxu0 %v934
    %1215 = vmatprep.subr.mxu0 %v937
    %1216 = vmatpush1.msra.mxu0 %v936
    %1217 = vmatprep.subr.mxu0 %v939
    %1218 = vmatpush1.msra.mxu0 %v938
    %1219 = vmatprep.subr.mxu0 %v941
    %1220 = vmatpush1.msra.mxu0 %v940
    %1221 = vmatprep.subr.mxu0 %v943
    %1222 = vmatpush1.msra.mxu0 %v942
    %1223 = vmatprep.subr.mxu0 %v945
    %1224 = vmatpush1.msra.mxu0 %v944
    %1225 = vmatprep.subr.mxu0 %v947
    %1226 = vmatpush1.msra.mxu0 %v946
    %1227 = vmatprep.subr.mxu0 %v949
    %1228 = vmatpush1.msra.mxu0 %v948
    %1229 = vmatprep.subr.mxu0 %v951
    %1230 = vmatpush1.msra.mxu0 %v950
    %1231 = vmatprep.subr.mxu0 %v953
    %1232 = vmatpush1.msra.mxu0 %v952
    %1233 = vmatprep.subr.mxu0 %v955
    %1234 = vmatpush1.msra.mxu0 %v954
    %1235 = vmatprep.subr.mxu0 %v957
    %1236 = vmatpush1.msra.mxu0 %v956
    %1237 = vmatprep.subr.mxu0 %v959
    %1238 = vmatpush1.msra.mxu0 %v958
    %1239 = vmatprep.subr.mxu0 %v961
    %1240 = vmatpush1.msra.mxu0 %v960
    %1241 = vmatprep.subr.mxu0 %v963
    %1242 = vmatpush1.msra.mxu0 %v962
    %1243 = vmatprep.subr.mxu0 %v965
    %1244 = vmatpush1.msra.mxu0 %v964
    %1245 = vmatprep.subr.mxu0 %v967
    %1246 = vmatpush1.msra.mxu0 %v966
    %1247 = vmatprep.subr.mxu0 %v969
    %1248 = vmatpush1.msra.mxu0 %v968
    %1249 = vmatprep.subr.mxu0 %v971
    %1250 = vmatpush1.msra.mxu0 %v970
    %1251 = vmatprep.subr.mxu0 %v973
    %1252 = vmatpush1.msra.mxu0 %v972
    %1253 = vmatprep.subr.mxu0 %v975
    %1254 = vmatpush1.msra.mxu0 %v974
    %1255 = vmatprep.subr.mxu0 %v977
    %1256 = vmatpush1.msra.mxu0 %v976
    %1257 = vmatprep.subr.mxu0 %v979
    %1258 = vmatpush1.msra.mxu0 %v978
    %1259 = vmatprep.subr.mxu0 %v981
    %1260 = vmatpush1.msra.mxu0 %v980
    %1261 = vmatprep.subr.mxu0 %v983
    %1262 = vmatpush1.msra.mxu0 %v982
    %1263 = vmatprep.subr.mxu0 %v985
    %1264 = vmatpush1.msra.mxu0 %v984
    %1265 = vmatprep.subr.mxu0 %v987
    %1266 = vmatpush1.msra.mxu0 %v986
    %1267 = vmatprep.subr.mxu0 %v989
    %1268 = vmatpush1.msra.mxu0 %v988
    %1269 = vmatprep.mubr.f32.mxu0 %v590
    %1270 = vmatmul.mubr.f32.gmra.mrb[0].mxu0 %v588
    %v1271 = vpop.f32.mrb[0].mxu0
    %v1272 = vadd.f32 %v1201, %v1271
    %v1273 = vpop.f32.mrb[0].mxu0
    %v1274 = vadd.f32 %v1203, %v1273
    %1275 = vdwg.mxu0
    %v1277 = vlaneseq
    %v1278 = vshrl.u32 %v1277, 7
    %v1279 = vsub.s32 0, %v1278
    %v1280 = vrot.slane %v990, %v1279
    %v1281 = vlaneseq
    %v1282 = vshrl.u32 %v1281, 7
    %v1283 = vsub.s32 1, %v1282
    %v1284 = vrot.slane %v990, %v1283
    %v1287 = vmul.f32 %v1272, %v1280
    %v1288 = vmul.f32 %v1274, %v1284
    %v1290 = vlaneseq
    %v1291 = vshrl.u32 %v1290, 7
    %v1292 = vsub.s32 0, %v1291
    %v1293 = vrot.slane %v991, %v1292
    %v1294 = vlaneseq
    %v1295 = vshrl.u32 %v1294, 7
    %v1296 = vsub.s32 1, %v1295
    %v1297 = vrot.slane %v991, %v1296
    %v1300 = vadd.f32 %v1287, %v1293
    %v1301 = vadd.f32 %v1288, %v1297
    %vm1302 = vcmp.ge.f32.partialorder %v1300, 0.0
    %vm1303 = vcmp.ge.f32.partialorder %v1301, 0.0
    %v1304 = vmul.f32 %v1300, 0.01
    %v1305 = vmul.f32 %v1301, 0.01
    %v1306 = vsel %vm1302, %v1300, %v1304
    %v1307 = vsel %vm1303, %v1301, %v1305
    %1308 = vmatprep.subr.mxu0 %v735
    %1309 = vmatpush1.msra.mxu0 %v734
    %1310 = vmatprep.subr.mxu0 %v737
    %1311 = vmatpush1.msra.mxu0 %v736
    %1312 = vmatprep.subr.mxu0 %v739
    %1313 = vmatpush1.msra.mxu0 %v738
    %1314 = vmatprep.subr.mxu0 %v741
    %1315 = vmatpush1.msra.mxu0 %v740
    %1316 = vmatprep.subr.mxu0 %v743
    %1317 = vmatpush1.msra.mxu0 %v742
    %1318 = vmatprep.subr.mxu0 %v745
    %1319 = vmatpush1.msra.mxu0 %v744
    %1320 = vmatprep.subr.mxu0 %v747
    %1321 = vmatpush1.msra.mxu0 %v746
    %1322 = vmatprep.subr.mxu0 %v749
    %1323 = vmatpush1.msra.mxu0 %v748
    %1324 = vmatprep.subr.mxu0 %v751
    %1325 = vmatpush1.msra.mxu0 %v750
    %1326 = vmatprep.subr.mxu0 %v753
    %1327 = vmatpush1.msra.mxu0 %v752
    %1328 = vmatprep.subr.mxu0 %v755
    %1329 = vmatpush1.msra.mxu0 %v754
    %1330 = vmatprep.subr.mxu0 %v757
    %1331 = vmatpush1.msra.mxu0 %v756
    %1332 = vmatprep.subr.mxu0 %v759
    %1333 = vmatpush1.msra.mxu0 %v758
    %1334 = vmatprep.subr.mxu0 %v761
    %1335 = vmatpush1.msra.mxu0 %v760
    %1336 = vmatprep.subr.mxu0 %v763
    %1337 = vmatpush1.msra.mxu0 %v762
    %1338 = vmatprep.subr.mxu0 %v765
    %1339 = vmatpush1.msra.mxu0 %v764
    %1340 = vmatprep.subr.mxu0 %v767
    %1341 = vmatpush1.msra.mxu0 %v766
    %1342 = vmatprep.subr.mxu0 %v769
    %1343 = vmatpush1.msra.mxu0 %v768
    %1344 = vmatprep.subr.mxu0 %v771
    %1345 = vmatpush1.msra.mxu0 %v770
    %1346 = vmatprep.subr.mxu0 %v773
    %1347 = vmatpush1.msra.mxu0 %v772
    %1348 = vmatprep.subr.mxu0 %v775
    %1349 = vmatpush1.msra.mxu0 %v774
    %1350 = vmatprep.subr.mxu0 %v777
    %1351 = vmatpush1.msra.mxu0 %v776
    %1352 = vmatprep.subr.mxu0 %v779
    %1353 = vmatpush1.msra.mxu0 %v778
    %1354 = vmatprep.subr.mxu0 %v781
    %1355 = vmatpush1.msra.mxu0 %v780
    %1356 = vmatprep.subr.mxu0 %v783
    %1357 = vmatpush1.msra.mxu0 %v782
    %1358 = vmatprep.subr.mxu0 %v785
    %1359 = vmatpush1.msra.mxu0 %v784
    %1360 = vmatprep.subr.mxu0 %v787
    %1361 = vmatpush1.msra.mxu0 %v786
    %1362 = vmatprep.subr.mxu0 %v789
    %1363 = vmatpush1.msra.mxu0 %v788
    %1364 = vmatprep.subr.mxu0 %v791
    %1365 = vmatpush1.msra.mxu0 %v790
    %1366 = vmatprep.subr.mxu0 %v793
    %1367 = vmatpush1.msra.mxu0 %v792
    %1368 = vmatprep.subr.mxu0 %v795
    %1369 = vmatpush1.msra.mxu0 %v794
    %1370 = vmatprep.subr.mxu0 %v797
    %1371 = vmatpush1.msra.mxu0 %v796
    %1372 = vmatprep.mubr.f32.mxu0 %v519
    %1373 = vmatmul.mubr.f32.gmra.mrb[0].mxu0 %v517
    %v1374 = vpop.f32.mrb[0].mxu0
    %v1375 = vadd.f32 0.0, %v1374
    %v1376 = vpop.f32.mrb[0].mxu0
    %v1377 = vadd.f32 0.0, %v1376
    %1378 = vdwg.mxu0
    %1379 = vmatprep.subr.mxu0 %v799
    %1380 = vmatpush1.msra.mxu0 %v798
    %1381 = vmatprep.subr.mxu0 %v801
    %1382 = vmatpush1.msra.mxu0 %v800
    %1383 = vmatprep.subr.mxu0 %v803
    %1384 = vmatpush1.msra.mxu0 %v802
    %1385 = vmatprep.subr.mxu0 %v805
    %1386 = vmatpush1.msra.mxu0 %v804
    %1387 = vmatprep.subr.mxu0 %v807
    %1388 = vmatpush1.msra.mxu0 %v806
    %1389 = vmatprep.subr.mxu0 %v809
    %1390 = vmatpush1.msra.mxu0 %v808
    %1391 = vmatprep.subr.mxu0 %v811
    %1392 = vmatpush1.msra.mxu0 %v810
    %1393 = vmatprep.subr.mxu0 %v813
    %1394 = vmatpush1.msra.mxu0 %v812
    %1395 = vmatprep.subr.mxu0 %v815
    %1396 = vmatpush1.msra.mxu0 %v814
    %1397 = vmatprep.subr.mxu0 %v817
    %1398 = vmatpush1.msra.mxu0 %v816
    %1399 = vmatprep.subr.mxu0 %v819
    %1400 = vmatpush1.msra.mxu0 %v818
    %1401 = vmatprep.subr.mxu0 %v821
    %1402 = vmatpush1.msra.mxu0 %v820
    %1403 = vmatprep.subr.mxu0 %v823
    %1404 = vmatpush1.msra.mxu0 %v822
    %1405 = vmatprep.subr.mxu0 %v825
    %1406 = vmatpush1.msra.mxu0 %v824
    %1407 = vmatprep.subr.mxu0 %v827
    %1408 = vmatpush1.msra.mxu0 %v826
    %1409 = vmatprep.subr.mxu0 %v829
    %1410 = vmatpush1.msra.mxu0 %v828
    %1411 = vmatprep.subr.mxu0 %v831
    %1412 = vmatpush1.msra.mxu0 %v830
    %1413 = vmatprep.subr.mxu0 %v833
    %1414 = vmatpush1.msra.mxu0 %v832
    %1415 = vmatprep.subr.mxu0 %v835
    %1416 = vmatpush1.msra.mxu0 %v834
    %1417 = vmatprep.subr.mxu0 %v837
    %1418 = vmatpush1.msra.mxu0 %v836
    %1419 = vmatprep.subr.mxu0 %v839
    %1420 = vmatpush1.msra.mxu0 %v838
    %1421 = vmatprep.subr.mxu0 %v841
    %1422 = vmatpush1.msra.mxu0 %v840
    %1423 = vmatprep.subr.mxu0 %v843
    %1424 = vmatpush1.msra.mxu0 %v842
    %1425 = vmatprep.subr.mxu0 %v845
    %1426 = vmatpush1.msra.mxu0 %v844
    %1427 = vmatprep.subr.mxu0 %v847
    %1428 = vmatpush1.msra.mxu0 %v846
    %1429 = vmatprep.subr.mxu0 %v849
    %1430 = vmatpush1.msra.mxu0 %v848
    %1431 = vmatprep.subr.mxu0 %v851
    %1432 = vmatpush1.msra.mxu0 %v850
    %1433 = vmatprep.subr.mxu0 %v853
    %1434 = vmatpush1.msra.mxu0 %v852
    %1435 = vmatprep.subr.mxu0 %v855
    %1436 = vmatpush1.msra.mxu0 %v854
    %1437 = vmatprep.subr.mxu0 %v857
    %1438 = vmatpush1.msra.mxu0 %v856
    %1439 = vmatprep.subr.mxu0 %v859
    %1440 = vmatpush1.msra.mxu0 %v858
    %1441 = vmatprep.subr.mxu0 %v861
    %1442 = vmatpush1.msra.mxu0 %v860
    %1443 = vmatprep.mubr.f32.mxu0 %v590
    %1444 = vmatmul.mubr.f32.gmra.mrb[0].mxu0 %v588
    %v1445 = vpop.f32.mrb[0].mxu0
    %v1446 = vadd.f32 %v1375, %v1445
    %v1447 = vpop.f32.mrb[0].mxu0
    %v1448 = vadd.f32 %v1377, %v1447
    %1449 = vdwg.mxu0
    %1450 = vmatprep.subr.mxu0 %v863
    %1451 = vmatpush1.msra.mxu0 %v862
    %1452 = vmatprep.subr.mxu0 %v865
    %1453 = vmatpush1.msra.mxu0 %v864
    %1454 = vmatprep.subr.mxu0 %v867
    %1455 = vmatpush1.msra.mxu0 %v866
    %1456 = vmatprep.subr.mxu0 %v869
    %1457 = vmatpush1.msra.mxu0 %v868
    %1458 = vmatprep.subr.mxu0 %v871
    %1459 = vmatpush1.msra.mxu0 %v870
    %1460 = vmatprep.subr.mxu0 %v873
    %1461 = vmatpush1.msra.mxu0 %v872
    %1462 = vmatprep.subr.mxu0 %v875
    %1463 = vmatpush1.msra.mxu0 %v874
    %1464 = vmatprep.subr.mxu0 %v877
    %1465 = vmatpush1.msra.mxu0 %v876
    %1466 = vmatprep.subr.mxu0 %v879
    %1467 = vmatpush1.msra.mxu0 %v878
    %1468 = vmatprep.subr.mxu0 %v881
    %1469 = vmatpush1.msra.mxu0 %v880
    %1470 = vmatprep.subr.mxu0 %v883
    %1471 = vmatpush1.msra.mxu0 %v882
    %1472 = vmatprep.subr.mxu0 %v885
    %1473 = vmatpush1.msra.mxu0 %v884
    %1474 = vmatprep.subr.mxu0 %v887
    %1475 = vmatpush1.msra.mxu0 %v886
    %1476 = vmatprep.subr.mxu0 %v889
    %1477 = vmatpush1.msra.mxu0 %v888
    %1478 = vmatprep.subr.mxu0 %v891
    %1479 = vmatpush1.msra.mxu0 %v890
    %1480 = vmatprep.subr.mxu0 %v893
    %1481 = vmatpush1.msra.mxu0 %v892
    %1482 = vmatprep.subr.mxu0 %v895
    %1483 = vmatpush1.msra.mxu0 %v894
    %1484 = vmatprep.subr.mxu0 %v897
    %1485 = vmatpush1.msra.mxu0 %v896
    %1486 = vmatprep.subr.mxu0 %v899
    %1487 = vmatpush1.msra.mxu0 %v898
    %1488 = vmatprep.subr.mxu0 %v901
    %1489 = vmatpush1.msra.mxu0 %v900
    %1490 = vmatprep.subr.mxu0 %v903
    %1491 = vmatpush1.msra.mxu0 %v902
    %1492 = vmatprep.subr.mxu0 %v905
    %1493 = vmatpush1.msra.mxu0 %v904
    %1494 = vmatprep.subr.mxu0 %v907
    %1495 = vmatpush1.msra.mxu0 %v906
    %1496 = vmatprep.subr.mxu0 %v909
    %1497 = vmatpush1.msra.mxu0 %v908
    %1498 = vmatprep.subr.mxu0 %v911
    %1499 = vmatpush1.msra.mxu0 %v910
    %1500 = vmatprep.subr.mxu0 %v913
    %1501 = vmatpush1.msra.mxu0 %v912
    %1502 = vmatprep.subr.mxu0 %v915
    %1503 = vmatpush1.msra.mxu0 %v914
    %1504 = vmatprep.subr.mxu0 %v917
    %1505 = vmatpush1.msra.mxu0 %v916
    %1506 = vmatprep.subr.mxu0 %v919
    %1507 = vmatpush1.msra.mxu0 %v918
    %1508 = vmatprep.subr.mxu0 %v921
    %1509 = vmatpush1.msra.mxu0 %v920
    %1510 = vmatprep.subr.mxu0 %v923
    %1511 = vmatpush1.msra.mxu0 %v922
    %1512 = vmatprep.subr.mxu0 %v925
    %1513 = vmatpush1.msra.mxu0 %v924
    %1514 = vmatprep.mubr.f32.mxu0 %v661
    %1515 = vmatmul.mubr.f32.gmra.mrb[0].mxu0 %v659
    %v1516 = vpop.f32.mrb[0].mxu0
    %v1517 = vadd.f32 %v1446, %v1516
    %v1518 = vpop.f32.mrb[0].mxu0
    %v1519 = vadd.f32 %v1448, %v1518
    %1520 = vdwg.mxu0
    %1521 = vmatprep.subr.mxu0 %v927
    %1522 = vmatpush1.msra.mxu0 %v926
    %1523 = vmatprep.subr.mxu0 %v929
    %1524 = vmatpush1.msra.mxu0 %v928
    %1525 = vmatprep.subr.mxu0 %v931
    %1526 = vmatpush1.msra.mxu0 %v930
    %1527 = vmatprep.subr.mxu0 %v933
    %1528 = vmatpush1.msra.mxu0 %v932
    %1529 = vmatprep.subr.mxu0 %v935
    %1530 = vmatpush1.msra.mxu0 %v934
    %1531 = vmatprep.subr.mxu0 %v937
    %1532 = vmatpush1.msra.mxu0 %v936
    %1533 = vmatprep.subr.mxu0 %v939
    %1534 = vmatpush1.msra.mxu0 %v938
    %1535 = vmatprep.subr.mxu0 %v941
    %1536 = vmatpush1.msra.mxu0 %v940
    %1537 = vmatprep.subr.mxu0 %v943
    %1538 = vmatpush1.msra.mxu0 %v942
    %1539 = vmatprep.subr.mxu0 %v945
    %1540 = vmatpush1.msra.mxu0 %v944
    %1541 = vmatprep.subr.mxu0 %v947
    %1542 = vmatpush1.msra.mxu0 %v946
    %1543 = vmatprep.subr.mxu0 %v949
    %1544 = vmatpush1.msra.mxu0 %v948
    %1545 = vmatprep.subr.mxu0 %v951
    %1546 = vmatpush1.msra.mxu0 %v950
    %1547 = vmatprep.subr.mxu0 %v953
    %1548 = vmatpush1.msra.mxu0 %v952
    %1549 = vmatprep.subr.mxu0 %v955
    %1550 = vmatpush1.msra.mxu0 %v954
    %1551 = vmatprep.subr.mxu0 %v957
    %1552 = vmatpush1.msra.mxu0 %v956
    %1553 = vmatprep.subr.mxu0 %v959
    %1554 = vmatpush1.msra.mxu0 %v958
    %1555 = vmatprep.subr.mxu0 %v961
    %1556 = vmatpush1.msra.mxu0 %v960
    %1557 = vmatprep.subr.mxu0 %v963
    %1558 = vmatpush1.msra.mxu0 %v962
    %1559 = vmatprep.subr.mxu0 %v965
    %1560 = vmatpush1.msra.mxu0 %v964
    %1561 = vmatprep.subr.mxu0 %v967
    %1562 = vmatpush1.msra.mxu0 %v966
    %1563 = vmatprep.subr.mxu0 %v969
    %1564 = vmatpush1.msra.mxu0 %v968
    %1565 = vmatprep.subr.mxu0 %v971
    %1566 = vmatpush1.msra.mxu0 %v970
    %1567 = vmatprep.subr.mxu0 %v973
    %1568 = vmatpush1.msra.mxu0 %v972
    %1569 = vmatprep.subr.mxu0 %v975
    %1570 = vmatpush1.msra.mxu0 %v974
    %1571 = vmatprep.subr.mxu0 %v977
    %1572 = vmatpush1.msra.mxu0 %v976
    %1573 = vmatprep.subr.mxu0 %v979
    %1574 = vmatpush1.msra.mxu0 %v978
    %1575 = vmatprep.subr.mxu0 %v981
    %1576 = vmatpush1.msra.mxu0 %v980
    %1577 = vmatprep.subr.mxu0 %v983
    %1578 = vmatpush1.msra.mxu0 %v982
    %1579 = vmatprep.subr.mxu0 %v985
    %1580 = vmatpush1.msra.mxu0 %v984
    %1581 = vmatprep.subr.mxu0 %v987
    %1582 = vmatpush1.msra.mxu0 %v986
    %1583 = vmatprep.subr.mxu0 %v989
    %1584 = vmatpush1.msra.mxu0 %v988
    %1585 = vmatprep.mubr.f32.mxu0 %v732
    %1586 = vmatmul.mubr.f32.gmra.mrb[0].mxu0 %v730
    %v1587 = vpop.f32.mrb[0].mxu0
    %v1588 = vadd.f32 %v1517, %v1587
    %v1589 = vpop.f32.mrb[0].mxu0
    %v1590 = vadd.f32 %v1519, %v1589
    %1591 = vdwg.mxu0
    %v1592 = vmul.f32 %v1588, %v1280
    %v1593 = vmul.f32 %v1590, %v1284
    %v1594 = vadd.f32 %v1592, %v1293
    %v1595 = vadd.f32 %v1593, %v1297
    %vm1596 = vcmp.ge.f32.partialorder %v1594, 0.0
    %vm1597 = vcmp.ge.f32.partialorder %v1595, 0.0
    %v1598 = vmul.f32 %v1594, 0.01
    %v1599 = vmul.f32 %v1595, 0.01
    %v1600 = vsel %vm1596, %v1594, %v1598
    %v1601 = vsel %vm1597, %v1595, %v1599
    %1602 = vst [vmem:[%s6] sm:$0xff] %v1306
    %1603 = vst [vmem:[%s6 + $0x8] sm:$0xff] %v1307
    %1604 = vst [vmem:[%s6 + $0x10] sm:$0xff] %v1600
    %1605 = vst [vmem:[%s6 + $0x18] sm:$0xff] %v1601
    // Predicated region
    $region34: #{identity_encoder_gcn_forward.1} parent=1 // pred_check
      _
    $region35: #{identity_encoder_gcn_forward.1} parent=1 // pred_check_branch
      %1607 = sbr.rel (0) target = $region37
    $region36: #{identity_encoder_gcn_forward.1} parent=1 // pred_region
      _
    $region37: #{identity_encoder_gcn_forward.1} parent=1 // pred_fallthru
      _
    // Predicated region
    $region38: #{identity_encoder_gcn_forward.1} parent=1 // pred_check
      _
    $region39: #{identity_encoder_gcn_forward.1} parent=1 // pred_check_branch
      %1609 = sbr.rel (0) target = $region41
    $region40: #{identity_encoder_gcn_forward.1} parent=1 // pred_region
      _
    $region41: #{identity_encoder_gcn_forward.1} parent=1 // pred_fallthru
      _
    %1610 = vsyncpa [#allocation3], 1
    %1611 = vsyncpa [#allocation5], 1

</llo_original>
